<compile_context>
chip_gen: v7x
topology: tpu7x:2x2x1
jax: 0.10.0
libtpu: 0.0.40
codegen_flags: <defaults>
</compile_context>

<pallas_src>
import functools
import math

import jax
import jax.numpy as jnp
from jax import lax
from jax.experimental import pallas as pl
from jax.experimental.pallas import tpu as pltpu


def _rup(x, m):
    return ((x + m - 1) // m) * m


def _pick_div(v, cands):
    for c in cands:
        if v % c == 0:
            return c
    return v


def _pick_bm(mp):
    # Prefer >=2 blocks along M (keeps both v7x TensorCores busy) when possible.
    for c in (512, 256, 128):
        if mp % c == 0 and mp // c >= 2:
            return c
    return _pick_div(mp, (256, 128, 64, 32, 16, 8))


# ----------------------------------------------------------------------------
# Pallas kernel 1: tiled bf16 matmul fused with bias add and optional SiLU
# ----------------------------------------------------------------------------
def _mm_kernel(a_ref, b_ref, bias_ref, o_ref, acc_ref, *, act):
    @pl.when(pl.program_id(2) == 0)
    def _():
        acc_ref[...] = jnp.zeros_like(acc_ref)

    acc_ref[...] += jnp.dot(a_ref[...], b_ref[...],
                            preferred_element_type=jnp.float32)

    @pl.when(pl.program_id(2) == pl.num_programs(2) - 1)
    def _():
        r = acc_ref[...] + bias_ref[...]          # f32 epilogue
        if act:                                   # SiLU = x * sigmoid(x)
            r = r * (1.0 / (1.0 + jnp.exp(-r)))
        o_ref[...] = r.astype(o_ref.dtype)


@functools.lru_cache(maxsize=None)
def _get_matmul(Mp, Kp, Np, act, bm, bn, bk, out_dtype):
    f = pl.pallas_call(
        functools.partial(_mm_kernel, act=act),
        out_shape=jax.ShapeDtypeStruct((Mp, Np), out_dtype),
        grid_spec=pltpu.PrefetchScalarGridSpec(
            num_scalar_prefetch=0,
            grid=(Mp // bm, Np // bn, Kp // bk),
            in_specs=[
                pl.BlockSpec((bm, bk), lambda i, j, k: (i, k)),
                pl.BlockSpec((bk, bn), lambda i, j, k: (k, j)),
                pl.BlockSpec((1, bn), lambda i, j, k: (0, j)),
            ],
            out_specs=pl.BlockSpec((bm, bn), lambda i, j, k: (i, j)),
            scratch_shapes=[pltpu.VMEM((bm, bn), jnp.float32)],
        ),
        compiler_params=pltpu.CompilerParams(
            dimension_semantics=("parallel", "parallel", "arbitrary")),
    )
    return jax.jit(f)


def matmul_bias_act(a, b_pad, bias_pad, act, out_dtype=jnp.bfloat16):
    """act(a @ b + bias).  a:[M,K]; b_pad:[Kp,Np] bf16 (prepared at init);
    bias_pad:[1,Np] f32.  Returns the padded [Mp,Np] result."""
    M, K = a.shape
    Kp, Np = b_pad.shape
    Mp = _rup(M, 8)
    bm = _pick_bm(Mp)
    bn = _pick_div(Np, (256, 128))
    bk = _pick_div(Kp, (512, 256, 128))
    a = a.astype(jnp.bfloat16)
    if Mp != M or Kp != K:
        a = jnp.pad(a, ((0, Mp - M), (0, Kp - K)))
    f = _get_matmul(Mp, Kp, Np, bool(act), bm, bn, bk, out_dtype)
    return f(a, b_pad, bias_pad)


# ----------------------------------------------------------------------------
# Pallas kernel 2: depthwise conv, tap-major layout [KK, P, C]
# ----------------------------------------------------------------------------
def _dw_kernel(p_ref, w_ref, b_ref, o_ref, *, act, kk):
    w = w_ref[...]                                      # [kk, C] f32 (hoisted)
    acc = jnp.zeros(o_ref.shape, jnp.float32)
    for t in range(kk):                                 # static unrolled taps
        acc = acc + p_ref[t].astype(jnp.float32) * w[t:t + 1, :]
    r = acc + b_ref[...]
    if act:
        r = r * (1.0 / (1.0 + jnp.exp(-r)))
    o_ref[...] = r.astype(o_ref.dtype)


@functools.lru_cache(maxsize=None)
def _get_dwconv(Pp, bp, KK, Cp, act, out_dtype):
    f = pl.pallas_call(
        functools.partial(_dw_kernel, act=act, kk=KK),
        out_shape=jax.ShapeDtypeStruct((Pp, Cp), out_dtype),
        grid_spec=pltpu.PrefetchScalarGridSpec(
            num_scalar_prefetch=0,
            grid=(Pp // bp,),
            in_specs=[
                pl.BlockSpec((KK, bp, Cp), lambda i: (0, i, 0)),
                pl.BlockSpec((KK, Cp), lambda i: (0, 0)),
                pl.BlockSpec((1, Cp), lambda i: (0, 0)),
            ],
            out_specs=pl.BlockSpec((bp, Cp), lambda i: (i, 0)),
        ),
        compiler_params=pltpu.CompilerParams(
            dimension_semantics=("parallel",)),
    )
    return jax.jit(f)


def dw_apply(pat, w_pad, b_pad, act, out_dtype=jnp.bfloat16):
    """pat:[KK,P,C] (tap-major), w_pad:[KK,Cp] f32, b_pad:[1,Cp] -> [Pp,Cp]."""
    KK, P, C = pat.shape
    Cp = w_pad.shape[1]
    bp = 256 if P >= 256 else _rup(P, 8)
    Pp = _rup(P, bp)
    if Pp != P or Cp != C:
        pat = jnp.pad(pat, ((0, 0), (0, Pp - P), (0, Cp - C)))
    f = _get_dwconv(Pp, bp, KK, Cp, bool(act), out_dtype)
    return f(pat.astype(jnp.bfloat16), w_pad, b_pad)


# ----------------------------------------------------------------------------
# Pallas kernel 3: batched single-pass attention (softmax stays in VMEM)
# ----------------------------------------------------------------------------
def _attn_kernel(q_ref, k_ref, v_ref, o_ref, *, scale, n):
    q = q_ref[0]                                        # [Np, kdp] bf16
    k = k_ref[0]                                        # [Np, kdp] bf16
    v = v_ref[0]                                        # [Np, hdp] bf16
    s = lax.dot_general(q, k, (((1,), (1,)), ((), ())),
                        preferred_element_type=jnp.float32) * scale   # [Np,Np]
    if n < s.shape[-1]:                                 # mask padded key tokens
        col = lax.broadcasted_iota(jnp.int32, s.shape, 1)
        s = jnp.where(col < n, s, -1e30)
    m = jnp.max(s, axis=-1, keepdims=True)
    p = jnp.exp(s - m)
    l = jnp.sum(p, axis=-1, keepdims=True)
    attn = (p / l).astype(q.dtype)
    o = lax.dot_general(attn, v, (((1,), (0,)), ((), ())),
                        preferred_element_type=jnp.float32)           # [Np,hdp]
    o_ref[0] = o.astype(o_ref.dtype)


@functools.lru_cache(maxsize=None)
def _get_attn(BH, Np, kdp, hdp, scale, n):
    f = pl.pallas_call(
        functools.partial(_attn_kernel, scale=scale, n=n),
        out_shape=jax.ShapeDtypeStruct((BH, Np, hdp), jnp.bfloat16),
        grid_spec=pltpu.PrefetchScalarGridSpec(
            num_scalar_prefetch=0,
            grid=(BH,),
            in_specs=[
                pl.BlockSpec((1, Np, kdp), lambda i: (i, 0, 0)),
                pl.BlockSpec((1, Np, kdp), lambda i: (i, 0, 0)),
                pl.BlockSpec((1, Np, hdp), lambda i: (i, 0, 0)),
            ],
            out_specs=pl.BlockSpec((1, Np, hdp), lambda i: (i, 0, 0)),
        ),
        compiler_params=pltpu.CompilerParams(
            dimension_semantics=("parallel",)),
    )
    return jax.jit(f)


# ----------------------------------------------------------------------------
# Plain-JAX glue (NHWC everywhere)
# ----------------------------------------------------------------------------
def _shifted_views(x, k, s, p):
    N, H, W, C = x.shape
    if p:
        x = jnp.pad(x, ((0, 0), (p, p), (p, p), (0, 0)))
    Ho = (H + 2 * p - k) // s + 1
    Wo = (W + 2 * p - k) // s + 1
    cols = []
    for dy in range(k):
        for dx in range(k):
            cols.append(x[:, dy:dy + s * Ho:s, dx:dx + s * Wo:s, :])
    return cols, Ho, Wo


def im2col(x, k, s, p):
    cols, Ho, Wo = _shifted_views(x, k, s, p)
    N, _, _, C = x.shape
    pat = jnp.stack(cols, axis=3)                       # [N,Ho,Wo,kk,C]
    return pat.reshape(N * Ho * Wo, k * k * C), Ho, Wo


def im2col_tapmajor(x, k, s, p):
    cols, Ho, Wo = _shifted_views(x, k, s, p)
    N, _, _, C = x.shape
    pat = jnp.stack(cols, axis=0)                       # [kk,N,Ho,Wo,C]
    return pat.reshape(k * k, N * Ho * Wo, C), Ho, Wo


def maxpool_nhwc(x, k, s, p):
    N, H, W, C = x.shape
    xp = jnp.pad(x, ((0, 0), (p, p), (p, p), (0, 0)),
                 constant_values=-jnp.inf)
    Ho = (H + 2 * p - k) // s + 1
    Wo = (W + 2 * p - k) // s + 1
    out = None
    for dy in range(k):
        for dx in range(k):
            v = xp[:, dy:dy + s * Ho:s, dx:dx + s * Wo:s, :]
            out = v if out is None else jnp.maximum(out, v)
    return out


def upsample2(x):   # nearest, scale 2, NHWC
    return jnp.repeat(jnp.repeat(x, 2, axis=1), 2, axis=2)


# ----------------------------------------------------------------------------
# Deterministic parameter creation
# ----------------------------------------------------------------------------
class Rng:
    def __init__(self, seed):
        self._key = jax.random.PRNGKey(seed)

    def next(self):
        self._key, k = jax.random.split(self._key)
        return k


# ----------------------------------------------------------------------------
# Modules (mirror the PyTorch definitions; BN folded, eval mode, NHWC)
# ----------------------------------------------------------------------------
class CBS:   # Conv + BN + SiLU
    def __init__(self, rng, c1, c2, k=1, s=1, p=None, g=1, act=True):
        self.k, self.s, self.g, self.act, self.c2 = k, s, g, act, c2
        self.p = (k // 2) if p is None else p
        if g != 1:
            assert g == c1 == c2, "only depthwise grouping used by this model"
        fan_in = (c1 // g) * k * k
        w = jax.random.normal(rng.next(), (c2, c1 // g, k, k),
                              jnp.float32) / math.sqrt(fan_in)
        gamma = 1.0 + 0.1 * jax.random.normal(rng.next(), (c2,), jnp.float32)
        beta = 0.1 * jax.random.normal(rng.next(), (c2,), jnp.float32)
        run_mean = jnp.zeros((c2,), jnp.float32)
        run_var = jnp.ones((c2,), jnp.float32)
        scale = gamma / jnp.sqrt(run_var + 1e-3)          # fold BN (eval)
        w = w * scale[:, None, None, None]
        b = beta - run_mean * scale
        if g == 1:
            K = k * k * c1
            Kp, Np = _rup(K, 128), _rup(c2, 128)
            Bm = jnp.transpose(w, (2, 3, 1, 0)).reshape(K, c2)
            self.w = jnp.pad(Bm, ((0, Kp - K), (0, Np - c2))).astype(jnp.bfloat16)
            self.b = jnp.pad(b.reshape(1, -1), ((0, 0), (0, Np - c2)))
        else:
            KK, Cp = k * k, _rup(c2, 128)
            w2 = jnp.transpose(w.reshape(c2, KK), (1, 0))   # [KK, C]
            self.w = jnp.pad(w2, ((0, 0), (0, Cp - c2)))    # f32
            self.b = jnp.pad(b.reshape(1, -1), ((0, 0), (0, Cp - c2)))

    def __call__(self, x):                                  # x: NHWC bf16
        n = x.shape[0]
        if self.g == 1:
            if self.k == 1 and self.s == 1 and self.p == 0:
                Ho, Wo = x.shape[1], x.shape[2]
                A = x.reshape(n * Ho * Wo, x.shape[3])
            else:
                A, Ho, Wo = im2col(x, self.k, self.s, self.p)
            out = matmul_bias_act(A, self.w, self.b, self.act)
        else:
            pat, Ho, Wo = im2col_tapmajor(x, self.k, self.s, self.p)
            out = dw_apply(pat, self.w, self.b, self.act)
        M = n * Ho * Wo
        if out.shape[0] != M or out.shape[1] != self.c2:
            out = out[:M, :self.c2]
        return out.reshape(n, Ho, Wo, self.c2)


class DWConv(CBS):
    def __init__(self, rng, c1, c2, k=1, s=1, act=True):
        super().__init__(rng, c1, c2, k, s, g=math.gcd(c1, c2), act=act)


class Conv2dPlain:   # nn.Conv2d(c1, c2, 1) with bias, no BN, no act; f32 out
    def __init__(self, rng, c1, c2, k=1):
        fan_in = c1 * k * k
        w = jax.random.normal(rng.next(), (c2, c1, k, k),
                              jnp.float32) / math.sqrt(fan_in)
        b = 0.01 * jax.random.normal(rng.next(), (c2,), jnp.float32)
        K = k * k * c1
        Kp, Np = _rup(K, 128), _rup(c2, 128)
        Bm = jnp.transpose(w, (2, 3, 1, 0)).reshape(K, c2)
        self.w = jnp.pad(Bm, ((0, Kp - K), (0, Np - c2))).astype(jnp.bfloat16)
        self.b = jnp.pad(b.reshape(1, -1), ((0, 0), (0, Np - c2)))
        self.c2 = c2

    def __call__(self, x):
        n, Ho, Wo, c1 = x.shape
        A = x.reshape(n * Ho * Wo, c1)
        out = matmul_bias_act(A, self.w, self.b, act=False,
                              out_dtype=jnp.float32)
        M = n * Ho * Wo
        if out.shape[0] != M or out.shape[1] != self.c2:
            out = out[:M, :self.c2]
        return out.reshape(n, Ho, Wo, self.c2)


class Bottleneck:
    def __init__(self, rng, c1, c2, shortcut=True, g=1, k=(3, 3), e=0.5):
        c_ = int(c2 * e)
        self.cv1 = CBS(rng, c1, c_, k[0], 1)
        self.cv2 = CBS(rng, c_, c2, k[1], 1, g=g)
        self.add = shortcut and c1 == c2

    def __call__(self, x):
        y = self.cv2(self.cv1(x))
        return x + y if self.add else y


class C3k:
    def __init__(self, rng, c1, c2, n=1, shortcut=True, g=1, e=0.5, k=3):
        c_ = int(c2 * e)
        self.cv1 = CBS(rng, c1, c_, 1, 1)
        self.cv2 = CBS(rng, c1, c_, 1, 1)
        self.cv3 = CBS(rng, 2 * c_, c2, 1, 1)
        self.m = [Bottleneck(rng, c_, c_, shortcut, g, k=(k, k), e=1.0)
                  for _ in range(n)]

    def __call__(self, x):
        y = self.cv1(x)
        for m in self.m:
            y = m(y)
        return self.cv3(jnp.concatenate([y, self.cv2(x)], axis=-1))


class C3K2:   # signature (c1, c2, c3k, n) to match both backbone/neck call sites
    def __init__(self, rng, c1, c2, c3k=False, n=1, e=0.5, g=1, shortcut=True):
        self.c = int(c2 * e)
        self.cv1 = CBS(rng, c1, 2 * self.c, 1, 1)
        self.cv2 = CBS(rng, (2 + n) * self.c, c2, 1, 1)
        self.m = [C3k(rng, self.c, self.c, 2, shortcut, g) if c3k
                  else Bottleneck(rng, self.c, self.c, shortcut, g)
                  for _ in range(n)]

    def __call__(self, x):
        y = list(jnp.split(self.cv1(x), 2, axis=-1))
        for m in self.m:
            y.append(m(y[-1]))
        return self.cv2(jnp.concatenate(y, axis=-1))


class SPPF:
    def __init__(self, rng, c1, c2, k=5):
        c_ = c1 // 2
        self.cv1 = CBS(rng, c1, c_, 1, 1)
        self.cv2 = CBS(rng, c_ * 4, c2, 1, 1)
        self.k = k

    def __call__(self, x):
        y = [self.cv1(x)]
        for _ in range(3):
            y.append(maxpool_nhwc(y[-1], self.k, 1, self.k // 2))
        return self.cv2(jnp.concatenate(y, axis=-1))


class Attention:
    def __init__(self, rng, dim, num_heads=8, attn_ratio=0.5):
        self.num_heads = num_heads
        self.head_dim = dim // num_heads
        self.key_dim = int(self.head_dim * attn_ratio)
        self.scale = self.key_dim ** -0.5
        nh_kd = self.key_dim * num_heads
        h = dim + nh_kd * 2
        self.dim = dim
        self.qkv = CBS(rng, dim, h, 1, act=False)
        self.proj = CBS(rng, dim, dim, 1, act=False)
        self.pe = CBS(rng, dim, dim, 3, 1, g=dim, act=False)

    def __call__(self, x):                                   # x: NHWC
        B, H, W, C = x.shape
        N = H * W
        nh, kd, hd = self.num_heads, self.key_dim, self.head_dim
        D = 2 * kd + hd
        qkv = self.qkv(x).reshape(B, N, nh, D)
        qkv = jnp.transpose(qkv, (0, 2, 1, 3))               # [B, nh, N, D]
        Np = _rup(N, 128)
        qkv_p = qkv if Np == N else jnp.pad(
            qkv, ((0, 0), (0, 0), (0, Np - N), (0, 0)))
        qkv_p = qkv_p.reshape(B * nh, Np, D).astype(jnp.bfloat16)
        kdp, hdp = _rup(kd, 128), _rup(hd, 128)
        q = jnp.pad(qkv_p[:, :, :kd], ((0, 0), (0, 0), (0, kdp - kd)))
        k = jnp.pad(qkv_p[:, :, kd:2 * kd], ((0, 0), (0, 0), (0, kdp - kd)))
        v = jnp.pad(qkv_p[:, :, 2 * kd:], ((0, 0), (0, 0), (0, hdp - hd)))
        f = _get_attn(B * nh, Np, kdp, hdp, float(self.scale), N)
        o = f(q, k, v)                                       # [B*nh, Np, hdp]
        o = o.reshape(B, nh, Np, hdp)[:, :, :N, :hd]
        o = jnp.transpose(o, (0, 2, 1, 3)).reshape(B, H, W, C)
        v_sp = jnp.transpose(qkv[:, :, :, 2 * kd:],
                             (0, 2, 1, 3)).reshape(B, H, W, C)
        x2 = o + self.pe(v_sp)
        return self.proj(x2)


class PSABlock:
    def __init__(self, rng, c, attn_ratio=0.5, num_heads=4, shortcut=True):
        self.attn = Attention(rng, c, num_heads=num_heads,
                              attn_ratio=attn_ratio)
        self.ffn = [CBS(rng, c, c * 2, 1), CBS(rng, c * 2, c, 1, act=False)]
        self.add = shortcut

    def __call__(self, x):
        x = x + self.attn(x) if self.add else self.attn(x)
        y = self.ffn[1](self.ffn[0](x))
        return x + y if self.add else y


class C2PSA:
    def __init__(self, rng, c1, c2, n=1, e=0.5):
        assert c1 == c2
        self.c = int(c1 * e)
        self.cv1 = CBS(rng, c1, 2 * self.c, 1, 1)
        self.cv2 = CBS(rng, 2 * self.c, c1, 1)
        self.m = [PSABlock(rng, self.c, attn_ratio=0.5,
                           num_heads=self.c // 64) for _ in range(n)]

    def __call__(self, x):
        y = self.cv1(x)
        a, bb = y[..., :self.c], y[..., self.c:]
        for m in self.m:
            bb = m(bb)
        return self.cv2(jnp.concatenate([a, bb], axis=-1))


class YoloBackbone:
    def __init__(self, rng, ch=(128, 256, 512)):
        self.cv1 = CBS(rng, 3, 32, 3, 2)
        self.cv2 = CBS(rng, 32, 64, 3, 2)
        self.c3k21 = C3K2(rng, 64, ch[0], c3k=False, n=2)
        self.cv3 = CBS(rng, ch[0], ch[0], 3, 2)
        self.c3k22 = C3K2(rng, ch[0], ch[1], c3k=False, n=2)
        self.cv4 = CBS(rng, ch[1], ch[1], 3, 2)
        self.c3k23 = C3K2(rng, ch[1], ch[1], c3k=True, n=2)
        self.cv5 = CBS(rng, ch[1], ch[2], 3, 2)
        self.c3k24 = C3K2(rng, ch[2], ch[2], c3k=True, n=2)
        self.sppf = SPPF(rng, ch[2], ch[2], 5)
        self.psa = C2PSA(rng, ch[2], ch[2])

    def __call__(self, x):
        x_out1 = self.cv3(self.c3k21(self.cv2(self.cv1(x))))
        x_out2 = self.cv4(self.c3k22(x_out1))
        x_out3 = self.psa(self.sppf(self.c3k24(self.cv5(self.c3k23(x_out2)))))
        return [x_out1, x_out2, x_out3]


class YoloNeck:
    def __init__(self, rng, ch=(128, 256, 512)):
        self.c3k21 = C3K2(rng, ch[2] + ch[1], ch[1], False, 2)
        self.c3k22 = C3K2(rng, ch[1] + ch[0], ch[0], False, 2)
        self.cv1 = CBS(rng, ch[0], ch[0], 3, 2)
        self.c3k23 = C3K2(rng, ch[1] + ch[0], ch[1], False, 2)
        self.cv2 = CBS(rng, ch[1], ch[1], 3, 2)
        self.c3k24 = C3K2(rng, ch[1] + ch[2], ch[2], True, 2)

    def __call__(self, x):
        x_out0_t = x[2]
        x_out1_t = self.c3k21(jnp.concatenate([upsample2(x[2]), x[1]], axis=-1))
        x_out2_t = self.c3k22(jnp.concatenate([upsample2(x_out1_t), x[0]],
                                              axis=-1))
        x_out0 = x_out2_t
        x_out1 = self.c3k23(jnp.concatenate([self.cv1(x_out0), x_out1_t],
                                            axis=-1))
        x_out2 = self.c3k24(jnp.concatenate([self.cv2(x_out1), x_out0_t],
                                            axis=-1))
        return [x_out0, x_out1, x_out2]


class YoloHead:
    def __init__(self, rng, nc=80, ch=(128, 256, 512)):
        self.nc, self.nl, self.reg_max = nc, len(ch), 16
        self.no = nc + self.reg_max * 4
        c2 = max(16, ch[0] // 4, self.reg_max * 4)
        c3 = max(ch[0], min(nc, 100))
        self.cv2, self.cv3 = [], []
        for x in ch:
            self.cv2.append([CBS(rng, x, c2, 3), CBS(rng, c2, c2, 3),
                             Conv2dPlain(rng, c2, 4 * self.reg_max, 1)])
            self.cv3.append([[DWConv(rng, x, x, 3), CBS(rng, x, c3, 1)],
                             [DWConv(rng, c3, c3, 3), CBS(rng, c3, c3, 1)],
                             Conv2dPlain(rng, c3, nc, 1)])
        # copy.deepcopy at init => one2one branches share identical weights
        self.one2one_cv2, self.one2one_cv3 = self.cv2, self.cv3
        # note: self.dfl exists in the PyTorch module but is unused in forward

    def forward_feat(self, x, cv2, cv3):
        y = []
        for i in range(self.nl):
            a = cv2[i][2](cv2[i][1](cv2[i][0](x[i])))
            b0 = cv3[i][0][1](cv3[i][0][0](x[i]))
            b1 = cv3[i][1][1](cv3[i][1][0](b0))
            b = cv3[i][2](b1)
            y.append(jnp.concatenate([a, b], axis=-1))
        return y

    def __call__(self, x):
        # .detach() only affects gradients; values are identical.
        one2one = self.forward_feat(x, self.one2one_cv2, self.one2one_cv3)
        one2many = self.forward_feat(x, self.cv2, self.cv3)
        return {'one2one': one2one, 'one2many': one2many}


class Yolov11:
    def __init__(self, rng, nc=80, ch=(128, 256, 512), stride=(8, 16, 32)):
        self.nc, self.nl, self.reg_max = nc, len(ch), 16
        self.no = nc + self.reg_max * 4
        self.stride = stride
        self.backbone = YoloBackbone(rng, ch)
        self.neck = YoloNeck(rng, ch)
        self.head = YoloHead(rng, nc=nc, ch=ch)
        # TODO(synk): DFL and Hyp are constructed in __init__ but never used in
        # forward, so they are not materialized here.

    def __call__(self, x):        # x: NCHW f32 -> dict of lists of NCHW f32
        xh = jnp.transpose(x, (0, 2, 3, 1)).astype(jnp.bfloat16)  # NHWC, bf16
        out = self.head(self.neck(self.backbone(xh)))

        def to_nchw(t):
            return jnp.transpose(t, (0, 3, 1, 2)).astype(jnp.float32)

        return {key: [to_nchw(t) for t in val] for key, val in out.items()}


# ----------------------------------------------------------------------------
if __name__ == "__main__":
    rng = Rng(0)
    nc, ch = 16, (32, 64, 128)            # small config (module accepts nc/ch)
    model = Yolov11(rng, nc=nc, ch=ch)

    x = jax.random.normal(jax.random.PRNGKey(0), (1, 3, 64, 64), jnp.float32)
    out = model(x)
    out = jax.block_until_ready(out)

    no = nc + 16 * 4
    expect = [(1, no, 8, 8), (1, no, 4, 4), (1, no, 2, 2)]
    for branch in ("one2one", "one2many"):
        assert len(out[branch]) == 3
        for y, shp in zip(out[branch], expect):
            assert tuple(y.shape) == shp, (branch, y.shape, shp)
            assert bool(jnp.all(jnp.isfinite(y)))
    print("KERNEL_OK")
</pallas_src>

<mosaic_0001>
module attributes {stable_mosaic.version = 11 : i64} {
  func.func @_mm_kernel(%arg0: i32, %arg1: i32, %arg2: i32, %arg3: memref<512x128xbf16, #tpu.memory_space<vmem>>, %arg4: memref<128x128xbf16, #tpu.memory_space<vmem>>, %arg5: memref<1x128xf32, #tpu.memory_space<vmem>>, %arg6: memref<512x128xbf16, #tpu.memory_space<vmem>>, %arg7: memref<512x128xf32, #tpu.memory_space<vmem>>) attributes {dimension_semantics = [#tpu.dimension_semantics<parallel>, #tpu.dimension_semantics<parallel>, #tpu.dimension_semantics<arbitrary>], iteration_bounds = array<i64: 2, 1, 1>, scalar_prefetch = 0 : i64, scratch_operands = 1 : i64, tpu.core_type = #tpu.core_type<tc>, window_params = [{transform_indices = @transform_0, window_bounds = array<i64: 512, 128>}, {transform_indices = @transform_1, window_bounds = array<i64: 128, 128>}, {transform_indices = @transform_2, window_bounds = array<i64: 1, 128>}, {transform_indices = @transform_3, window_bounds = array<i64: 512, 128>}]} {
    %c0_i32 = arith.constant 0 : i32
    %0 = arith.cmpi eq, %arg2, %c0_i32 : i32
    %1 = arith.extui %0 : i1 to i32
    %c0_i32_0 = arith.constant 0 : i32
    %2 = arith.cmpi ne, %1, %c0_i32_0 : i32
    scf.if %2 {
      %cst_10 = arith.constant 0.000000e+00 : f32
      %12 = vector.broadcast %cst_10 : f32 to vector<512x128xf32>
      %c0_11 = arith.constant 0 : index
      %c0_12 = arith.constant 0 : index
      %13 = vector.load %arg7[%c0_11, %c0_12] : memref<512x128xf32, #tpu.memory_space<vmem>>, vector<512x128xf32>
      tpu.vector_store %arg7[%c0_11, %c0_12], %12 {strides = array<i32>} : memref<512x128xf32, #tpu.memory_space<vmem>>, vector<512x128xf32>,
    } else {
    }
    %c0 = arith.constant 0 : index
    %c0_1 = arith.constant 0 : index
    %3 = vector.load %arg7[%c0, %c0_1] : memref<512x128xf32, #tpu.memory_space<vmem>>, vector<512x128xf32>
    %c0_2 = arith.constant 0 : index
    %c0_3 = arith.constant 0 : index
    %4 = vector.load %arg3[%c0_2, %c0_3] : memref<512x128xbf16, #tpu.memory_space<vmem>>, vector<512x128xbf16>
    %c0_4 = arith.constant 0 : index
    %c0_5 = arith.constant 0 : index
    %5 = vector.load %arg4[%c0_4, %c0_5] : memref<128x128xbf16, #tpu.memory_space<vmem>>, vector<128x128xbf16>
    %cst = arith.constant dense<0.000000e+00> : vector<512x128xf32>
    %6 = tpu.matmul %4, %5, %cst {dimension_numbers = #tpu.dot_dimension_numbers<[1], [0], [0], [1], [0, 0, 1, 1], [], []>} : vector<512x128xbf16>, vector<128x128xbf16>, vector<512x128xf32> -> vector<512x128xf32>
    %7 = arith.addf %3, %6 : vector<512x128xf32>
    %c0_6 = arith.constant 0 : index
    %c0_7 = arith.constant 0 : index
    %8 = vector.load %arg7[%c0_6, %c0_7] : memref<512x128xf32, #tpu.memory_space<vmem>>, vector<512x128xf32>
    tpu.vector_store %arg7[%c0_6, %c0_7], %7 {strides = array<i32>} : memref<512x128xf32, #tpu.memory_space<vmem>>, vector<512x128xf32>,
    %c0_i32_8 = arith.constant 0 : i32
    %9 = arith.cmpi eq, %arg2, %c0_i32_8 : i32
    %10 = arith.extui %9 : i1 to i32
    %c0_i32_9 = arith.constant 0 : i32
    %11 = arith.cmpi ne, %10, %c0_i32_9 : i32
    scf.if %11 {
      %c0_10 = arith.constant 0 : index
      %c0_11 = arith.constant 0 : index
      %12 = vector.load %arg7[%c0_10, %c0_11] : memref<512x128xf32, #tpu.memory_space<vmem>>, vector<512x128xf32>
      %c0_12 = arith.constant 0 : index
      %c0_13 = arith.constant 0 : index
      %13 = vector.load %arg5[%c0_12, %c0_13] : memref<1x128xf32, #tpu.memory_space<vmem>>, vector<1x128xf32>
      %14 = vector.broadcast %13 : vector<1x128xf32> to vector<512x128xf32>
      %15 = arith.addf %12, %14 : vector<512x128xf32>
      %cst_14 = arith.constant 0.000000e+00 : f32
      %16 = vector.broadcast %cst_14 : f32 to vector<512x128xf32>
      %17 = arith.subf %16, %15 : vector<512x128xf32>
      %18 = math.exp %17 : vector<512x128xf32>
      %cst_15 = arith.constant 1.000000e+00 : f32
      %19 = vector.broadcast %cst_15 : f32 to vector<512x128xf32>
      %20 = arith.addf %19, %18 : vector<512x128xf32>
      %cst_16 = arith.constant 1.000000e+00 : f32
      %21 = vector.broadcast %cst_16 : f32 to vector<512x128xf32>
      %22 = arith.divf %21, %20 : vector<512x128xf32>
      %23 = arith.mulf %15, %22 : vector<512x128xf32>
      %24 = arith.truncf %23 : vector<512x128xf32> to vector<512x128xbf16>
      %c0_17 = arith.constant 0 : index
      %c0_18 = arith.constant 0 : index
      %25 = vector.load %arg6[%c0_17, %c0_18] : memref<512x128xbf16, #tpu.memory_space<vmem>>, vector<512x128xbf16>
      tpu.vector_store %arg6[%c0_17, %c0_18], %24 {strides = array<i32>} : memref<512x128xbf16, #tpu.memory_space<vmem>>, vector<512x128xbf16>,
    } else {
    }
    return
  }
  func.func @transform_0(%arg0: i32, %arg1: i32, %arg2: i32) -> (i32, i32) {
    %c0_i32 = arith.constant 0 : i32
    return %arg0, %arg2 : i32, i32
  }
  func.func @transform_1(%arg0: i32, %arg1: i32, %arg2: i32) -> (i32, i32) {
    %c0_i32 = arith.constant 0 : i32
    return %arg2, %arg1 : i32, i32
  }
  func.func @transform_2(%arg0: i32, %arg1: i32, %arg2: i32) -> (i32, i32) {
    %c0_i32 = arith.constant 0 : i32
    %c0_i32_0 = arith.constant 0 : i32
    return %c0_i32, %arg1 : i32, i32
  }
  func.func @transform_3(%arg0: i32, %arg1: i32, %arg2: i32) -> (i32, i32) {
    %c0_i32 = arith.constant 0 : i32
    return %arg0, %arg1 : i32, i32
  }
}

</mosaic_0001>

<llo_original>
// kernel: tpu_custom_call.1
$region0: #{tpu_custom_call.1}
  #allocation0 [shape = 'u32[]', space=smem, size = 0x4, offset = 0x4, fixed_abs, tag = 'smem constant byte address 0x4 - core index']
  #allocation1 [shape = 'u32[144,128]{1,0:T(1,128)}', space=vmem, size = 0x12000, scoped, tag = 'internal scratch']
  #allocation2 [shape = 'f32[512,128]{1,0:T(8,128)}', space=vmem, size = 0x40000, scoped, tag = 'scratch operand']
  %s0 = inlined_call_operand.hbm [shape: bf16[1024,128], index: 0, kind: input, shape index: {}]
  %s1 = inlined_call_operand.hbm [shape: bf16[128,128], index: 1, kind: input, shape index: {}]
  %s2 = inlined_call_operand.vmem [shape: f32[1,128], index: 2, kind: input, shape index: {}]
  %s3 = inlined_call_operand.hbm [shape: bf16[1024,128], index: 3, kind: output, shape index: {}]
  %s4 = sld [smem:[#allocation0]]
  $region61: #{tpu_custom_call.1} parent=0
    _
  %s6 = ssub.s32 1, %s4
  %s7 = scalar_select 0, %s6, %s4
  $region1: #{tpu_custom_call.1} parent=0
    #allocation3 [shape = 'u8[262144]{0}', space=vmem, size = 0x40000, scoped, tag = 'input window, operand 0']
    #allocation4 [shape = 's32[2]{0}', space=sflag, size = 0x8, scoped, tag = 'scoped memory for tpu_custom_call.1']
    #allocation5 [shape = 's32[2]{0}', space=sflag, size = 0x8, scoped, tag = 'scoped memory for tpu_custom_call.1']
    #allocation6 [shape = 'u8[32768]{0}', space=vmem, size = 0x8000, scoped, tag = 'input window, operand 1, single buffered']
    #allocation7 [shape = 's32[1]{0}', space=sflag, size = 0x4, scoped, tag = 'scoped memory for tpu_custom_call.1']
    #allocation8 [shape = 'u8[262144]{0}', space=vmem, size = 0x40000, scoped, tag = 'output window, operand 0']
    %8 = vsyncpa [#allocation4], 0
    %s9 = scalar_lea.sflag [#allocation4], 1
    %10 = vsyncpa %s9, 0
    %11 = vsyncpa [#allocation7], 0
    %12 = vsyncpa [#allocation5], 0
    %s13 = scalar_lea.sflag [#allocation5], 1
    %14 = vsyncpa %s13, 0
    loop: start=0, step=1, limit=4
    $region2: #{tpu_custom_call.1} parent=1 // loop_pre_header
      _
    $region3: #{tpu_custom_call.1} parent=1 // loop_header
      %s16 = sphi 0, %s20
      %p17 = scmp.ge.s32.totalorder %s16, 4
      %s23 = sphi 0, %s42
      %s24 = sphi 0, %s38
      %s25 = sphi 0, %s34
      %s26 = sphi 0, %s23
      %s27 = sphi 0, %s24
      %s28 = sphi 0, %s25
      %s29 = sphi 0, %s26
      %s30 = sphi 0, %s27
      %s31 = sphi 0, %s28
      %s47 = sphi 0, %s49
      %s50 = sphi 0, %s47
      %s51 = sphi 0, %s50
      %s67 = sphi 0, %s51
      %s75 = sphi 0, %s77
      %s78 = sphi 0, %s75
      %s79 = sphi 0, %s78
      %s95 = sphi 0, %s79
      %s101 = sphi 0, %s103
      %s104 = sphi 0, %s101
      %s105 = sphi 0, %s104
      %s121 = sphi 0, %s105
      %s129 = sphi 0, %s131
      %s132 = sphi 0, %s129
      %s133 = sphi 0, %s132
      %s149 = sphi 0, %s133
    $region4: #{tpu_custom_call.1} parent=1 // loop_header_branch
      %19 = sbr.rel (%p17) target = $region8
    $region5: #{tpu_custom_call.1} parent=1 // loop_body
      %s21 = ssub.s32 %s16, 1
      %s22 = ssub.s32 %s16, 2
      %s32 = sadd.s32 1, %s25
      %p33 = scmp.ge.s32.totalorder %s32, 1
      %s34 = scalar_select %p33, 0, %s32
      %s35 = sadd.s32 1, %s24
      %s36 = scalar_select %p33, %s35, %s24
      %p37 = scmp.ge.s32.totalorder %s36, 1
      %s38 = scalar_select %p37, 0, %s36
      %s39 = sadd.s32 1, %s23
      %s40 = scalar_select %p37, %s39, %s23
      %p41 = scmp.ge.s32.totalorder %s40, 2
      %s42 = scalar_select %p41, 0, %s40
      %s43 = ssub.s32 %s23, %s42
      %s44 = ssub.s32 %s25, %s34
      %s45 = sor.u32 %s43, %s44
      %p46 = scmp.eq.s32.totalorder %s45, 0
      %s48 = sadd.s32 %s47, 1
      %s49 = scalar_select %p46, %s47, %s48
      %p52 = pneg %p46
      %p53 = scmp.eq.s32.totalorder %s16, 1
      %p54 = por %p52, %p53
      %p55 = scmp.ne.s32.totalorder %s47, %s50
      %p56 = scmp.eq.s32.totalorder %s16, 0
      %p57 = por %p55, %p56
      %p58 = scmp.ne.s32.totalorder %s47, %s50
      %p59 = scmp.eq.s32.totalorder %s21, 1
      %p60 = por %p58, %p59
      %p61 = scmp.ne.s32.totalorder %s50, %s51
      %p62 = scmp.eq.s32.totalorder %s21, 0
      %p63 = por %p61, %p62
      %p64 = scmp.ne.s32.totalorder %s50, %s51
      %p65 = scmp.eq.s32.totalorder %s22, 1
      %p66 = por %p64, %p65
      %p68 = scmp.ne.s32.totalorder %s51, %s67
      %p69 = scmp.eq.s32.totalorder %s22, 0
      %p70 = por %p68, %p69
      %s71 = ssub.s32 %s25, %s34
      %s72 = ssub.s32 %s24, %s38
      %s73 = sor.u32 %s71, %s72
      %p74 = scmp.eq.s32.totalorder %s73, 0
      %s76 = sadd.s32 %s75, 1
      %s77 = scalar_select %p74, %s75, %s76
      %p80 = pneg %p74
      %p81 = scmp.eq.s32.totalorder %s16, 1
      %p82 = por %p80, %p81
      %p83 = scmp.ne.s32.totalorder %s75, %s78
      %p84 = scmp.eq.s32.totalorder %s16, 0
      %p85 = por %p83, %p84
      %p86 = scmp.ne.s32.totalorder %s75, %s78
      %p87 = scmp.eq.s32.totalorder %s21, 1
      %p88 = por %p86, %p87
      %p89 = scmp.ne.s32.totalorder %s78, %s79
      %p90 = scmp.eq.s32.totalorder %s21, 0
      %p91 = por %p89, %p90
      %p92 = scmp.ne.s32.totalorder %s78, %s79
      %p93 = scmp.eq.s32.totalorder %s22, 1
      %p94 = por %p92, %p93
      %p96 = scmp.ne.s32.totalorder %s79, %s95
      %p97 = scmp.eq.s32.totalorder %s22, 0
      %p98 = por %p96, %p97
      %s99 = ssub.s32 %s24, %s38
      %p100 = scmp.eq.s32.totalorder %s99, 0
      %s102 = sadd.s32 %s101, 1
      %s103 = scalar_select %p100, %s101, %s102
      %p106 = pneg %p100
      %p107 = scmp.eq.s32.totalorder %s16, 1
      %p108 = por %p106, %p107
      %p109 = scmp.ne.s32.totalorder %s101, %s104
      %p110 = scmp.eq.s32.totalorder %s16, 0
      %p111 = por %p109, %p110
      %p112 = scmp.ne.s32.totalorder %s101, %s104
      %p113 = scmp.eq.s32.totalorder %s21, 1
      %p114 = por %p112, %p113
      %p115 = scmp.ne.s32.totalorder %s104, %s105
      %p116 = scmp.eq.s32.totalorder %s21, 0
      %p117 = por %p115, %p116
      %p118 = scmp.ne.s32.totalorder %s104, %s105
      %p119 = scmp.eq.s32.totalorder %s22, 1
      %p120 = por %p118, %p119
      %p122 = scmp.ne.s32.totalorder %s105, %s121
      %p123 = scmp.eq.s32.totalorder %s22, 0
      %p124 = por %p122, %p123
      %s125 = ssub.s32 %s23, %s42
      %s126 = ssub.s32 %s24, %s38
      %s127 = sor.u32 %s125, %s126
      %p128 = scmp.eq.s32.totalorder %s127, 0
      %s130 = sadd.s32 %s129, 1
      %s131 = scalar_select %p128, %s129, %s130
      %p134 = pneg %p128
      %p135 = scmp.eq.s32.totalorder %s16, 1
      %p136 = por %p134, %p135
      %p137 = scmp.ne.s32.totalorder %s129, %s132
      %p138 = scmp.eq.s32.totalorder %s16, 0
      %p139 = por %p137, %p138
      %p140 = scmp.ne.s32.totalorder %s129, %s132
      %p141 = scmp.eq.s32.totalorder %s21, 1
      %p142 = por %p140, %p141
      %p143 = scmp.ne.s32.totalorder %s132, %s133
      %p144 = scmp.eq.s32.totalorder %s21, 0
      %p145 = por %p143, %p144
      %p146 = scmp.ne.s32.totalorder %s132, %s133
      %p147 = scmp.eq.s32.totalorder %s22, 1
      %p148 = por %p146, %p147
      %p150 = scmp.ne.s32.totalorder %s133, %s149
      %p151 = scmp.eq.s32.totalorder %s22, 0
      %p152 = por %p150, %p151
      %p153 = scmp.le.s32.totalorder 1, %s16
      %p154 = scmp.lt.s32.totalorder %s16, 3
      %p155 = pnand %p153, %p154
      %p156 = pneg %p155
      // Predicated region
      $region9: #{tpu_custom_call.1} parent=5 // pred_check
        _
      $region10: #{tpu_custom_call.1} parent=5 // pred_check_branch
        %158 = sbr.rel (%p155) target = $region12
      $region11: #{tpu_custom_call.1} parent=5 // pred_region
        %s159 = ssub.s32 %s16, 1
        // Predicated region
        $region13: #{tpu_custom_call.1} parent=11 // pred_check
          %p160 = pneg %p91
        $region14: #{tpu_custom_call.1} parent=11 // pred_check_branch
          %162 = sbr.rel (%p160) target = $region16
        $region15: #{tpu_custom_call.1} parent=11 // pred_region
          %s163 = smul.u32 16, %s28
          %s165 = ssub.s32 1024, 1024
          %166 = vsyncadd [#allocation7], %s165
          %s167 = sadd.s32 %s27, %s163
          %s168 = smul.addr %s167, 64
          %s169 = scalar_lea.hbm %s1, %s168
          %s170 = sshll.u32 [#allocation6], 4
          %s171 = int_to_ptr.vmem [resolvable:$true] %s170
          %176 = dma.hbm_to_vmem [thread:$0]  %s169, 1024, %s171, [#allocation7], 64, 64, 4
        $region16: #{tpu_custom_call.1} parent=11 // pred_fallthru
          _
        // Predicated region
        $region17: #{tpu_custom_call.1} parent=11 // pred_check
          %p177 = pneg %p117
        $region18: #{tpu_custom_call.1} parent=11 // pred_check_branch
          %179 = sbr.rel (%p177) target = $region20
        $region19: #{tpu_custom_call.1} parent=11 // pred_region
          %p180 = scmp.lt.s32.totalorder %s27, 0
          %s181 = scalar_select %p180, %s27, 0
          %s182 = scalar_lea.vmem %s2, %s181
        $region20: #{tpu_custom_call.1} parent=11 // pred_fallthru
          _
      $region12: #{tpu_custom_call.1} parent=5 // pred_fallthru
        _
      %p183 = scmp.lt.s32.totalorder %s16, 2
      // Predicated region
      $region21: #{tpu_custom_call.1} parent=5 // pred_check
        %p184 = pneg %p183
      $region22: #{tpu_custom_call.1} parent=5 // pred_check_branch
        %186 = sbr.rel (%p184) target = $region24
      $region23: #{tpu_custom_call.1} parent=5 // pred_region
        // Predicated region
        $region25: #{tpu_custom_call.1} parent=23 // pred_check
          %p187 = pneg %p57
        $region26: #{tpu_custom_call.1} parent=23 // pred_check_branch
          %189 = sbr.rel (%p187) target = $region28
        $region27: #{tpu_custom_call.1} parent=23 // pred_region
          %s190 = sand.u32 %s47, 1
          %s191 = scalar_lea.sflag [#allocation4], %s190
          %s192 = sand.u32 %s47, 1
          %s193 = smul.addr %s192, 256
          %s194 = scalar_lea.vmem [#allocation3], %s193
          %s195 = smul.u32 64, %s23
          %s197 = ssub.s32 4096, 4096
          %198 = vsyncadd %s191, %s197
          %s199 = sadd.s32 %s25, %s195
          %s200 = smul.addr %s199, 64
          %s201 = scalar_lea.hbm %s0, %s200
          %s202 = sshll.u32 %s194, 4
          %s203 = int_to_ptr.vmem [resolvable:$true] %s202
          %208 = dma.hbm_to_vmem [thread:$0]  %s201, 4096, %s203, %s191, 64, 64, 4
        $region28: #{tpu_custom_call.1} parent=23 // pred_fallthru
          _
      $region24: #{tpu_custom_call.1} parent=5 // pred_fallthru
        _
      %p209 = scmp.le.s32.totalorder 1, %s16
      %p210 = scmp.lt.s32.totalorder %s16, 3
      %p211 = pnand %p209, %p210
      %p212 = pneg %p211
      // Predicated region
      $region29: #{tpu_custom_call.1} parent=5 // pred_check
        _
      $region30: #{tpu_custom_call.1} parent=5 // pred_check_branch
        %214 = sbr.rel (%p211) target = $region32
      $region31: #{tpu_custom_call.1} parent=5 // pred_region
        %s215 = ssub.s32 %s16, 1
        %s216 = sand.u32 %s50, 1
        %s217 = scalar_lea.sflag [#allocation4], %s216
        %s218 = sand.u32 %s50, 1
        %s219 = smul.addr %s218, 256
        %s220 = scalar_lea.vmem [#allocation3], %s219
        // Predicated region
        $region33: #{tpu_custom_call.1} parent=31 // pred_check
          %p221 = pneg %p63
        $region34: #{tpu_custom_call.1} parent=31 // pred_check_branch
          %223 = sbr.rel (%p221) target = $region36
        $region35: #{tpu_custom_call.1} parent=31 // pred_region
          %224 = dma.done %s217, 4096
        $region36: #{tpu_custom_call.1} parent=31 // pred_fallthru
          _
        // Predicated region
        $region37: #{tpu_custom_call.1} parent=31 // pred_check
          %p225 = pneg %p91
        $region38: #{tpu_custom_call.1} parent=31 // pred_check_branch
          %227 = sbr.rel (%p225) target = $region40
        $region39: #{tpu_custom_call.1} parent=31 // pred_region
          %228 = dma.done [#allocation7], 1024
        $region40: #{tpu_custom_call.1} parent=31 // pred_fallthru
          _
        %s229 = sand.u32 %s50, 1
        %s230 = scalar_lea.sflag [#allocation4], %s229
        %s231 = sand.u32 %s50, 1
        %s232 = smul.addr %s231, 256
        %s233 = scalar_lea.vmem [#allocation3], %s232
        %p234 = pneg %p63
        %p235 = pneg %p60
        %p236 = pneg %p91
        %p237 = pneg %p88
        %p238 = scmp.lt.s32.totalorder %s27, 0
        %s239 = scalar_select %p238, %s27, 0
        %s240 = scalar_lea.vmem %s2, %s239
        %p241 = pneg %p117
        %p242 = pneg %p114
        %p243 = pneg %p145
        %p244 = pneg %p142
        %s245 = sand.u32 %s132, 1
        %s246 = scalar_lea.sflag [#allocation5], %s245
        %s247 = sand.u32 %s132, 1
        %s248 = smul.addr %s247, 256
        %s249 = scalar_lea.vmem [#allocation8], %s248
        %s250 = smul.u32 64, %s26
        %s251 = smul.u32 16, %s28
        %p252 = scmp.lt.s32.totalorder %s27, 0
        %s253 = scalar_select %p252, %s27, 0
        %s254 = scalar_lea.vmem %s2, %s253
        %s255 = smul.u32 64, %s26
        %p257 = scmp.eq.s32.totalorder %s28, 0
        // Predicated region
        $region41: #{tpu_custom_call.1} parent=31 // pred_check
          %p258 = pneg %p257
        $region42: #{tpu_custom_call.1} parent=31 // pred_check_branch
          %260 = sbr.rel (%p258) target = $region44
        $region43: #{tpu_custom_call.1} parent=31 // pred_region
          %261 = vst [vmem:[#allocation2] sm:$0xff] 0.0
          %262 = vst [vmem:[#allocation2 + $0x8] sm:$0xff] 0.0
          %263 = vst [vmem:[#allocation2 + $0x10] sm:$0xff] 0.0
          %264 = vst [vmem:[#allocation2 + $0x18] sm:$0xff] 0.0
          %265 = vst [vmem:[#allocation2 + $0x20] sm:$0xff] 0.0
          %266 = vst [vmem:[#allocation2 + $0x28] sm:$0xff] 0.0
          %267 = vst [vmem:[#allocation2 + $0x30] sm:$0xff] 0.0
          %268 = vst [vmem:[#allocation2 + $0x38] sm:$0xff] 0.0
          %269 = vst [vmem:[#allocation2 + $0x40] sm:$0xff] 0.0
          %270 = vst [vmem:[#allocation2 + $0x48] sm:$0xff] 0.0
          %271 = vst [vmem:[#allocation2 + $0x50] sm:$0xff] 0.0
          %272 = vst [vmem:[#allocation2 + $0x58] sm:$0xff] 0.0
          %273 = vst [vmem:[#allocation2 + $0x60] sm:$0xff] 0.0
          %274 = vst [vmem:[#allocation2 + $0x68] sm:$0xff] 0.0
          %275 = vst [vmem:[#allocation2 + $0x70] sm:$0xff] 0.0
          %276 = vst [vmem:[#allocation2 + $0x78] sm:$0xff] 0.0
          %277 = vst [vmem:[#allocation2 + $0x80] sm:$0xff] 0.0
          %278 = vst [vmem:[#allocation2 + $0x88] sm:$0xff] 0.0
          %279 = vst [vmem:[#allocation2 + $0x90] sm:$0xff] 0.0
          %280 = vst [vmem:[#allocation2 + $0x98] sm:$0xff] 0.0
          %281 = vst [vmem:[#allocation2 + $0xa0] sm:$0xff] 0.0
          %282 = vst [vmem:[#allocation2 + $0xa8] sm:$0xff] 0.0
          %283 = vst [vmem:[#allocation2 + $0xb0] sm:$0xff] 0.0
          %284 = vst [vmem:[#allocation2 + $0xb8] sm:$0xff] 0.0
          %285 = vst [vmem:[#allocation2 + $0xc0] sm:$0xff] 0.0
          %286 = vst [vmem:[#allocation2 + $0xc8] sm:$0xff] 0.0
          %287 = vst [vmem:[#allocation2 + $0xd0] sm:$0xff] 0.0
          %288 = vst [vmem:[#allocation2 + $0xd8] sm:$0xff] 0.0
          %289 = vst [vmem:[#allocation2 + $0xe0] sm:$0xff] 0.0
          %290 = vst [vmem:[#allocation2 + $0xe8] sm:$0xff] 0.0
          %291 = vst [vmem:[#allocation2 + $0xf0] sm:$0xff] 0.0
          %292 = vst [vmem:[#allocation2 + $0xf8] sm:$0xff] 0.0
          %293 = vst [vmem:[#allocation2 + $0x100] sm:$0xff] 0.0
          %294 = vst [vmem:[#allocation2 + $0x108] sm:$0xff] 0.0
          %295 = vst [vmem:[#allocation2 + $0x110] sm:$0xff] 0.0
          %296 = vst [vmem:[#allocation2 + $0x118] sm:$0xff] 0.0
          %297 = vst [vmem:[#allocation2 + $0x120] sm:$0xff] 0.0
          %298 = vst [vmem:[#allocation2 + $0x128] sm:$0xff] 0.0
          %299 = vst [vmem:[#allocation2 + $0x130] sm:$0xff] 0.0
          %300 = vst [vmem:[#allocation2 + $0x138] sm:$0xff] 0.0
          %301 = vst [vmem:[#allocation2 + $0x140] sm:$0xff] 0.0
          %302 = vst [vmem:[#allocation2 + $0x148] sm:$0xff] 0.0
          %303 = vst [vmem:[#allocation2 + $0x150] sm:$0xff] 0.0
          %304 = vst [vmem:[#allocation2 + $0x158] sm:$0xff] 0.0
          %305 = vst [vmem:[#allocation2 + $0x160] sm:$0xff] 0.0
          %306 = vst [vmem:[#allocation2 + $0x168] sm:$0xff] 0.0
          %307 = vst [vmem:[#allocation2 + $0x170] sm:$0xff] 0.0
          %308 = vst [vmem:[#allocation2 + $0x178] sm:$0xff] 0.0
          %309 = vst [vmem:[#allocation2 + $0x180] sm:$0xff] 0.0
          %310 = vst [vmem:[#allocation2 + $0x188] sm:$0xff] 0.0
          %311 = vst [vmem:[#allocation2 + $0x190] sm:$0xff] 0.0
          %312 = vst [vmem:[#allocation2 + $0x198] sm:$0xff] 0.0
          %313 = vst [vmem:[#allocation2 + $0x1a0] sm:$0xff] 0.0
          %314 = vst [vmem:[#allocation2 + $0x1a8] sm:$0xff] 0.0
          %315 = vst [vmem:[#allocation2 + $0x1b0] sm:$0xff] 0.0
          %316 = vst [vmem:[#allocation2 + $0x1b8] sm:$0xff] 0.0
          %317 = vst [vmem:[#allocation2 + $0x1c0] sm:$0xff] 0.0
          %318 = vst [vmem:[#allocation2 + $0x1c8] sm:$0xff] 0.0
          %319 = vst [vmem:[#allocation2 + $0x1d0] sm:$0xff] 0.0
          %320 = vst [vmem:[#allocation2 + $0x1d8] sm:$0xff] 0.0
          %321 = vst [vmem:[#allocation2 + $0x1e0] sm:$0xff] 0.0
          %322 = vst [vmem:[#allocation2 + $0x1e8] sm:$0xff] 0.0
          %323 = vst [vmem:[#allocation2 + $0x1f0] sm:$0xff] 0.0
          %324 = vst [vmem:[#allocation2 + $0x1f8] sm:$0xff] 0.0
        $region44: #{tpu_custom_call.1} parent=31 // pred_fallthru
          _
        %v325 = vld [vmem:[#allocation2] sm:$0xff]
        %v326 = vld [vmem:[#allocation2 + $0x8] sm:$0xff]
        %v327 = vld [vmem:[#allocation2 + $0x10] sm:$0xff]
        %v328 = vld [vmem:[#allocation2 + $0x18] sm:$0xff]
        %v329 = vld [vmem:[#allocation2 + $0x20] sm:$0xff]
        %v330 = vld [vmem:[#allocation2 + $0x28] sm:$0xff]
        %v331 = vld [vmem:[#allocation2 + $0x30] sm:$0xff]
        %v332 = vld [vmem:[#allocation2 + $0x38] sm:$0xff]
        %v333 = vld [vmem:[#allocation2 + $0x40] sm:$0xff]
        %v334 = vld [vmem:[#allocation2 + $0x48] sm:$0xff]
        %v335 = vld [vmem:[#allocation2 + $0x50] sm:$0xff]
        %v336 = vld [vmem:[#allocation2 + $0x58] sm:$0xff]
        %v337 = vld [vmem:[#allocation2 + $0x60] sm:$0xff]
        %v338 = vld [vmem:[#allocation2 + $0x68] sm:$0xff]
        %v339 = vld [vmem:[#allocation2 + $0x70] sm:$0xff]
        %v340 = vld [vmem:[#allocation2 + $0x78] sm:$0xff]
        %v341 = vld [vmem:[#allocation2 + $0x80] sm:$0xff]
        %v342 = vld [vmem:[#allocation2 + $0x88] sm:$0xff]
        %v343 = vld [vmem:[#allocation2 + $0x90] sm:$0xff]
        %v344 = vld [vmem:[#allocation2 + $0x98] sm:$0xff]
        %v345 = vld [vmem:[#allocation2 + $0xa0] sm:$0xff]
        %v346 = vld [vmem:[#allocation2 + $0xa8] sm:$0xff]
        %v347 = vld [vmem:[#allocation2 + $0xb0] sm:$0xff]
        %v348 = vld [vmem:[#allocation2 + $0xb8] sm:$0xff]
        %v349 = vld [vmem:[#allocation2 + $0xc0] sm:$0xff]
        %v350 = vld [vmem:[#allocation2 + $0xc8] sm:$0xff]
        %v351 = vld [vmem:[#allocation2 + $0xd0] sm:$0xff]
        %v352 = vld [vmem:[#allocation2 + $0xd8] sm:$0xff]
        %v353 = vld [vmem:[#allocation2 + $0xe0] sm:$0xff]
        %v354 = vld [vmem:[#allocation2 + $0xe8] sm:$0xff]
        %v355 = vld [vmem:[#allocation2 + $0xf0] sm:$0xff]
        %v356 = vld [vmem:[#allocation2 + $0xf8] sm:$0xff]
        %v357 = vld [vmem:[#allocation2 + $0x100] sm:$0xff]
        %v358 = vld [vmem:[#allocation2 + $0x108] sm:$0xff]
        %v359 = vld [vmem:[#allocation2 + $0x110] sm:$0xff]
        %v360 = vld [vmem:[#allocation2 + $0x118] sm:$0xff]
        %v361 = vld [vmem:[#allocation2 + $0x120] sm:$0xff]
        %v362 = vld [vmem:[#allocation2 + $0x128] sm:$0xff]
        %v363 = vld [vmem:[#allocation2 + $0x130] sm:$0xff]
        %v364 = vld [vmem:[#allocation2 + $0x138] sm:$0xff]
        %v365 = vld [vmem:[#allocation2 + $0x140] sm:$0xff]
        %v366 = vld [vmem:[#allocation2 + $0x148] sm:$0xff]
        %v367 = vld [vmem:[#allocation2 + $0x150] sm:$0xff]
        %v368 = vld [vmem:[#allocation2 + $0x158] sm:$0xff]
        %v369 = vld [vmem:[#allocation2 + $0x160] sm:$0xff]
        %v370 = vld [vmem:[#allocation2 + $0x168] sm:$0xff]
        %v371 = vld [vmem:[#allocation2 + $0x170] sm:$0xff]
        %v372 = vld [vmem:[#allocation2 + $0x178] sm:$0xff]
        %v373 = vld [vmem:[#allocation2 + $0x180] sm:$0xff]
        %v374 = vld [vmem:[#allocation2 + $0x188] sm:$0xff]
        %v375 = vld [vmem:[#allocation2 + $0x190] sm:$0xff]
        %v376 = vld [vmem:[#allocation2 + $0x198] sm:$0xff]
        %v377 = vld [vmem:[#allocation2 + $0x1a0] sm:$0xff]
        %v378 = vld [vmem:[#allocation2 + $0x1a8] sm:$0xff]
        %v379 = vld [vmem:[#allocation2 + $0x1b0] sm:$0xff]
        %v380 = vld [vmem:[#allocation2 + $0x1b8] sm:$0xff]
        %v381 = vld [vmem:[#allocation2 + $0x1c0] sm:$0xff]
        %v382 = vld [vmem:[#allocation2 + $0x1c8] sm:$0xff]
        %v383 = vld [vmem:[#allocation2 + $0x1d0] sm:$0xff]
        %v384 = vld [vmem:[#allocation2 + $0x1d8] sm:$0xff]
        %v385 = vld [vmem:[#allocation2 + $0x1e0] sm:$0xff]
        %v386 = vld [vmem:[#allocation2 + $0x1e8] sm:$0xff]
        %v387 = vld [vmem:[#allocation2 + $0x1f0] sm:$0xff]
        %v388 = vld [vmem:[#allocation2 + $0x1f8] sm:$0xff]
        %v389 = vld [vmem:[%s220] sm:$0xf]
        %v390 = vld [vmem:[%s220 + $0x4] sm:$0xf]
        %v391 = vld [vmem:[%s220 + $0x8] sm:$0xf]
        %v392 = vld [vmem:[%s220 + $0xc] sm:$0xf]
        %v393 = vld [vmem:[%s220 + $0x10] sm:$0xf]
        %v394 = vld [vmem:[%s220 + $0x14] sm:$0xf]
        %v395 = vld [vmem:[%s220 + $0x18] sm:$0xf]
        %v396 = vld [vmem:[%s220 + $0x1c] sm:$0xf]
        %v397 = vld [vmem:[%s220 + $0x20] sm:$0xf]
        %v398 = vld [vmem:[%s220 + $0x24] sm:$0xf]
        %v399 = vld [vmem:[%s220 + $0x28] sm:$0xf]
        %v400 = vld [vmem:[%s220 + $0x2c] sm:$0xf]
        %v401 = vld [vmem:[%s220 + $0x30] sm:$0xf]
        %v402 = vld [vmem:[%s220 + $0x34] sm:$0xf]
        %v403 = vld [vmem:[%s220 + $0x38] sm:$0xf]
        %v404 = vld [vmem:[%s220 + $0x3c] sm:$0xf]
        %v405 = vld [vmem:[%s220 + $0x40] sm:$0xf]
        %v406 = vld [vmem:[%s220 + $0x44] sm:$0xf]
        %v407 = vld [vmem:[%s220 + $0x48] sm:$0xf]
        %v408 = vld [vmem:[%s220 + $0x4c] sm:$0xf]
        %v409 = vld [vmem:[%s220 + $0x50] sm:$0xf]
        %v410 = vld [vmem:[%s220 + $0x54] sm:$0xf]
        %v411 = vld [vmem:[%s220 + $0x58] sm:$0xf]
        %v412 = vld [vmem:[%s220 + $0x5c] sm:$0xf]
        %v413 = vld [vmem:[%s220 + $0x60] sm:$0xf]
        %v414 = vld [vmem:[%s220 + $0x64] sm:$0xf]
        %v415 = vld [vmem:[%s220 + $0x68] sm:$0xf]
        %v416 = vld [vmem:[%s220 + $0x6c] sm:$0xf]
        %v417 = vld [vmem:[%s220 + $0x70] sm:$0xf]
        %v418 = vld [vmem:[%s220 + $0x74] sm:$0xf]
        %v419 = vld [vmem:[%s220 + $0x78] sm:$0xf]
        %v420 = vld [vmem:[%s220 + $0x7c] sm:$0xf]
        %v421 = vld [vmem:[%s220 + $0x80] sm:$0xf]
        %v422 = vld [vmem:[%s220 + $0x84] sm:$0xf]
        %v423 = vld [vmem:[%s220 + $0x88] sm:$0xf]
        %v424 = vld [vmem:[%s220 + $0x8c] sm:$0xf]
        %v425 = vld [vmem:[%s220 + $0x90] sm:$0xf]
        %v426 = vld [vmem:[%s220 + $0x94] sm:$0xf]
        %v427 = vld [vmem:[%s220 + $0x98] sm:$0xf]
        %v428 = vld [vmem:[%s220 + $0x9c] sm:$0xf]
        %v429 = vld [vmem:[%s220 + $0xa0] sm:$0xf]
        %v430 = vld [vmem:[%s220 + $0xa4] sm:$0xf]
        %v431 = vld [vmem:[%s220 + $0xa8] sm:$0xf]
        %v432 = vld [vmem:[%s220 + $0xac] sm:$0xf]
        %v433 = vld [vmem:[%s220 + $0xb0] sm:$0xf]
        %v434 = vld [vmem:[%s220 + $0xb4] sm:$0xf]
        %v435 = vld [vmem:[%s220 + $0xb8] sm:$0xf]
        %v436 = vld [vmem:[%s220 + $0xbc] sm:$0xf]
        %v437 = vld [vmem:[%s220 + $0xc0] sm:$0xf]
        %v438 = vld [vmem:[%s220 + $0xc4] sm:$0xf]
        %v439 = vld [vmem:[%s220 + $0xc8] sm:$0xf]
        %v440 = vld [vmem:[%s220 + $0xcc] sm:$0xf]
        %v441 = vld [vmem:[%s220 + $0xd0] sm:$0xf]
        %v442 = vld [vmem:[%s220 + $0xd4] sm:$0xf]
        %v443 = vld [vmem:[%s220 + $0xd8] sm:$0xf]
        %v444 = vld [vmem:[%s220 + $0xdc] sm:$0xf]
        %v445 = vld [vmem:[%s220 + $0xe0] sm:$0xf]
        %v446 = vld [vmem:[%s220 + $0xe4] sm:$0xf]
        %v447 = vld [vmem:[%s220 + $0xe8] sm:$0xf]
        %v448 = vld [vmem:[%s220 + $0xec] sm:$0xf]
        %v449 = vld [vmem:[%s220 + $0xf0] sm:$0xf]
        %v450 = vld [vmem:[%s220 + $0xf4] sm:$0xf]
        %v451 = vld [vmem:[%s220 + $0xf8] sm:$0xf]
        %v452 = vld [vmem:[%s220 + $0xfc] sm:$0xf]
        %v453 = vld [vmem:[#allocation6] sm:$0xf]
        %v454 = vld [vmem:[#allocation6 + $0x4] sm:$0xf]
        %v455 = vld [vmem:[#allocation6 + $0x8] sm:$0xf]
        %v456 = vld [vmem:[#allocation6 + $0xc] sm:$0xf]
        %v457 = vld [vmem:[#allocation6 + $0x10] sm:$0xf]
        %v458 = vld [vmem:[#allocation6 + $0x14] sm:$0xf]
        %v459 = vld [vmem:[#allocation6 + $0x18] sm:$0xf]
        %v460 = vld [vmem:[#allocation6 + $0x1c] sm:$0xf]
        %v461 = vld [vmem:[#allocation6 + $0x20] sm:$0xf]
        %v462 = vld [vmem:[#allocation6 + $0x24] sm:$0xf]
        %v463 = vld [vmem:[#allocation6 + $0x28] sm:$0xf]
        %v464 = vld [vmem:[#allocation6 + $0x2c] sm:$0xf]
        %v465 = vld [vmem:[#allocation6 + $0x30] sm:$0xf]
        %v466 = vld [vmem:[#allocation6 + $0x34] sm:$0xf]
        %v467 = vld [vmem:[#allocation6 + $0x38] sm:$0xf]
        %v468 = vld [vmem:[#allocation6 + $0x3c] sm:$0xf]
        %v533 = vunpack.c.l.b16 %v389
        %v534 = vunpack.c.l.b16 %v390
        %v535 = vunpack.c.l.b16 %v391
        %v536 = vunpack.c.l.b16 %v392
        %v537 = vunpack.c.l.b16 %v393
        %v538 = vunpack.c.l.b16 %v394
        %v539 = vunpack.c.l.b16 %v395
        %v540 = vunpack.c.l.b16 %v396
        %v541 = vunpack.c.l.b16 %v397
        %v542 = vunpack.c.l.b16 %v398
        %v543 = vunpack.c.l.b16 %v399
        %v544 = vunpack.c.l.b16 %v400
        %v545 = vunpack.c.l.b16 %v401
        %v546 = vunpack.c.l.b16 %v402
        %v547 = vunpack.c.l.b16 %v403
        %v548 = vunpack.c.l.b16 %v404
        %v549 = vunpack.c.l.b16 %v405
        %v550 = vunpack.c.l.b16 %v406
        %v551 = vunpack.c.l.b16 %v407
        %v552 = vunpack.c.l.b16 %v408
        %v553 = vunpack.c.l.b16 %v409
        %v554 = vunpack.c.l.b16 %v410
        %v555 = vunpack.c.l.b16 %v411
        %v556 = vunpack.c.l.b16 %v412
        %v557 = vunpack.c.l.b16 %v413
        %v558 = vunpack.c.l.b16 %v414
        %v559 = vunpack.c.l.b16 %v415
        %v560 = vunpack.c.l.b16 %v416
        %v561 = vunpack.c.l.b16 %v417
        %v562 = vunpack.c.l.b16 %v418
        %v563 = vunpack.c.l.b16 %v419
        %v564 = vunpack.c.l.b16 %v420
        %v565 = vunpack.c.l.b16 %v421
        %v566 = vunpack.c.l.b16 %v422
        %v567 = vunpack.c.l.b16 %v423
        %v568 = vunpack.c.l.b16 %v424
        %v569 = vunpack.c.l.b16 %v425
        %v570 = vunpack.c.l.b16 %v426
        %v571 = vunpack.c.l.b16 %v427
        %v572 = vunpack.c.l.b16 %v428
        %v573 = vunpack.c.l.b16 %v429
        %v574 = vunpack.c.l.b16 %v430
        %v575 = vunpack.c.l.b16 %v431
        %v576 = vunpack.c.l.b16 %v432
        %v577 = vunpack.c.l.b16 %v433
        %v578 = vunpack.c.l.b16 %v434
        %v579 = vunpack.c.l.b16 %v435
        %v580 = vunpack.c.l.b16 %v436
        %v581 = vunpack.c.l.b16 %v437
        %v582 = vunpack.c.l.b16 %v438
        %v583 = vunpack.c.l.b16 %v439
        %v584 = vunpack.c.l.b16 %v440
        %v585 = vunpack.c.l.b16 %v441
        %v586 = vunpack.c.l.b16 %v442
        %v587 = vunpack.c.l.b16 %v443
        %v588 = vunpack.c.l.b16 %v444
        %v589 = vunpack.c.l.b16 %v445
        %v590 = vunpack.c.l.b16 %v446
        %v591 = vunpack.c.l.b16 %v447
        %v592 = vunpack.c.l.b16 %v448
        %v593 = vunpack.c.l.b16 %v449
        %v594 = vunpack.c.l.b16 %v450
        %v595 = vunpack.c.l.b16 %v451
        %v596 = vunpack.c.l.b16 %v452
        %v597 = vpack.c.b16 %v534, %v533
        %v598 = vpack.c.b16 %v536, %v535
        %v599 = vpack.c.b16 %v538, %v537
        %v600 = vpack.c.b16 %v540, %v539
        %v601 = vpack.c.b16 %v542, %v541
        %v602 = vpack.c.b16 %v544, %v543
        %v603 = vpack.c.b16 %v546, %v545
        %v604 = vpack.c.b16 %v548, %v547
        %v605 = vpack.c.b16 %v550, %v549
        %v606 = vpack.c.b16 %v552, %v551
        %v607 = vpack.c.b16 %v554, %v553
        %v608 = vpack.c.b16 %v556, %v555
        %v609 = vpack.c.b16 %v558, %v557
        %v610 = vpack.c.b16 %v560, %v559
        %v611 = vpack.c.b16 %v562, %v561
        %v612 = vpack.c.b16 %v564, %v563
        %v613 = vpack.c.b16 %v566, %v565
        %v614 = vpack.c.b16 %v568, %v567
        %v615 = vpack.c.b16 %v570, %v569
        %v616 = vpack.c.b16 %v572, %v571
        %v617 = vpack.c.b16 %v574, %v573
        %v618 = vpack.c.b16 %v576, %v575
        %v619 = vpack.c.b16 %v578, %v577
        %v620 = vpack.c.b16 %v580, %v579
        %v621 = vpack.c.b16 %v582, %v581
        %v622 = vpack.c.b16 %v584, %v583
        %v623 = vpack.c.b16 %v586, %v585
        %v624 = vpack.c.b16 %v588, %v587
        %v625 = vpack.c.b16 %v590, %v589
        %v626 = vpack.c.b16 %v592, %v591
        %v627 = vpack.c.b16 %v594, %v593
        %v628 = vpack.c.b16 %v596, %v595
        %v677 = vunpack.c.l.b16 %v453
        %v678 = vunpack.c.l.b16 %v454
        %v679 = vunpack.c.l.b16 %v455
        %v680 = vunpack.c.l.b16 %v456
        %v681 = vunpack.c.l.b16 %v457
        %v682 = vunpack.c.l.b16 %v458
        %v683 = vunpack.c.l.b16 %v459
        %v684 = vunpack.c.l.b16 %v460
        %v685 = vunpack.c.l.b16 %v461
        %v686 = vunpack.c.l.b16 %v462
        %v687 = vunpack.c.l.b16 %v463
        %v688 = vunpack.c.l.b16 %v464
        %v689 = vunpack.c.l.b16 %v465
        %v690 = vunpack.c.l.b16 %v466
        %v691 = vunpack.c.l.b16 %v467
        %v692 = vunpack.c.l.b16 %v468
        %v693 = vpack.c.b16 %v678, %v677
        %v694 = vpack.c.b16 %v680, %v679
        %v695 = vpack.c.b16 %v682, %v681
        %v696 = vpack.c.b16 %v684, %v683
        %v697 = vpack.c.b16 %v686, %v685
        %v698 = vpack.c.b16 %v688, %v687
        %v699 = vpack.c.b16 %v690, %v689
        %v700 = vpack.c.b16 %v692, %v691
        %709 = vmatprep.subr.bf16.mxu0 0
        %710 = vmatpush1.bf16.msra.mxu0 %v693
        %711 = vmatprep.subr.bf16.mxu0 0
        %712 = vmatpush1.bf16.msra.mxu0 %v694
        %713 = vmatprep.subr.bf16.mxu0 0
        %714 = vmatpush1.bf16.msra.mxu0 %v695
        %715 = vmatprep.subr.bf16.mxu0 0
        %716 = vmatpush1.bf16.msra.mxu0 %v696
        %717 = vmatprep.subr.bf16.mxu0 0
        %718 = vmatpush1.bf16.msra.mxu0 %v697
        %719 = vmatprep.subr.bf16.mxu0 0
        %720 = vmatpush1.bf16.msra.mxu0 %v698
        %721 = vmatprep.subr.bf16.mxu0 0
        %722 = vmatpush1.bf16.msra.mxu0 %v699
        %723 = vmatprep.subr.bf16.mxu0 0
        %724 = vmatpush1.bf16.msra.mxu0 %v700
        %725 = vmatprep.subr.bf16.mxu0 0
        %726 = vmatpush1.bf16.msra.mxu0 0
        %727 = vmatprep.subr.bf16.mxu0 0
        %728 = vmatpush1.bf16.msra.mxu0 0
        %729 = vmatprep.subr.bf16.mxu0 0
        %730 = vmatpush1.bf16.msra.mxu0 0
        %731 = vmatprep.subr.bf16.mxu0 0
        %732 = vmatpush1.bf16.msra.mxu0 0
        %733 = vmatprep.subr.bf16.mxu0 0
        %734 = vmatpush1.bf16.msra.mxu0 0
        %735 = vmatprep.subr.bf16.mxu0 0
        %736 = vmatpush1.bf16.msra.mxu0 0
        %737 = vmatprep.subr.bf16.mxu0 0
        %738 = vmatpush1.bf16.msra.mxu0 0
        %739 = vmatprep.subr.bf16.mxu0 0
        %740 = vmatpush1.bf16.msra.mxu0 0
        %741 = vmatprep.mubr.bf16.mxu0 0
        %742 = vmatmul.mubr.bf16.gmra.mrb[0].mxu0 %v597
        %v743 = vpop.f32.mrb[0].mxu0
        %v744 = vadd.f32 0.0, %v743
        %v745 = vpop.f32.mrb[0].mxu0
        %v746 = vpop.f32.mrb[0].mxu0
        %v747 = vadd.f32 0.0, %v746
        %v748 = vpop.f32.mrb[0].mxu0
        %749 = vmatprep.mubr.bf16.mxu0 0
        %750 = vmatmul.mubr.bf16.gmra.mrb[0].mxu0 %v598
        %v751 = vpop.f32.mrb[0].mxu0
        %v752 = vadd.f32 0.0, %v751
        %v753 = vpop.f32.mrb[0].mxu0
        %v754 = vpop.f32.mrb[0].mxu0
        %v755 = vadd.f32 0.0, %v754
        %v756 = vpop.f32.mrb[0].mxu0
        %757 = vmatprep.mubr.bf16.mxu0 0
        %758 = vmatmul.mubr.bf16.gmra.mrb[0].mxu0 %v599
        %v759 = vpop.f32.mrb[0].mxu0
        %v760 = vadd.f32 0.0, %v759
        %v761 = vpop.f32.mrb[0].mxu0
        %v762 = vpop.f32.mrb[0].mxu0
        %v763 = vadd.f32 0.0, %v762
        %v764 = vpop.f32.mrb[0].mxu0
        %765 = vmatprep.mubr.bf16.mxu0 0
        %766 = vmatmul.mubr.bf16.gmra.mrb[0].mxu0 %v600
        %v767 = vpop.f32.mrb[0].mxu0
        %v768 = vadd.f32 0.0, %v767
        %v769 = vpop.f32.mrb[0].mxu0
        %v770 = vpop.f32.mrb[0].mxu0
        %v771 = vadd.f32 0.0, %v770
        %v772 = vpop.f32.mrb[0].mxu0
        %773 = vmatprep.mubr.bf16.mxu0 0
        %774 = vmatmul.mubr.bf16.gmra.mrb[0].mxu0 %v601
        %v775 = vpop.f32.mrb[0].mxu0
        %v776 = vadd.f32 0.0, %v775
        %v777 = vpop.f32.mrb[0].mxu0
        %v778 = vpop.f32.mrb[0].mxu0
        %v779 = vadd.f32 0.0, %v778
        %v780 = vpop.f32.mrb[0].mxu0
        %781 = vmatprep.mubr.bf16.mxu0 0
        %782 = vmatmul.mubr.bf16.gmra.mrb[0].mxu0 %v602
        %v783 = vpop.f32.mrb[0].mxu0
        %v784 = vadd.f32 0.0, %v783
        %v785 = vpop.f32.mrb[0].mxu0
        %v786 = vpop.f32.mrb[0].mxu0
        %v787 = vadd.f32 0.0, %v786
        %v788 = vpop.f32.mrb[0].mxu0
        %789 = vmatprep.mubr.bf16.mxu0 0
        %790 = vmatmul.mubr.bf16.gmra.mrb[0].mxu0 %v603
        %v791 = vpop.f32.mrb[0].mxu0
        %v792 = vadd.f32 0.0, %v791
        %v793 = vpop.f32.mrb[0].mxu0
        %v794 = vpop.f32.mrb[0].mxu0
        %v795 = vadd.f32 0.0, %v794
        %v796 = vpop.f32.mrb[0].mxu0
        %797 = vmatprep.mubr.bf16.mxu0 0
        %798 = vmatmul.mubr.bf16.gmra.mrb[0].mxu0 %v604
        %v799 = vpop.f32.mrb[0].mxu0
        %v800 = vadd.f32 0.0, %v799
        %v801 = vpop.f32.mrb[0].mxu0
        %v802 = vpop.f32.mrb[0].mxu0
        %v803 = vadd.f32 0.0, %v802
        %v804 = vpop.f32.mrb[0].mxu0
        %805 = vmatprep.mubr.bf16.mxu0 0
        %806 = vmatmul.mubr.bf16.gmra.mrb[0].mxu0 %v605
        %v807 = vpop.f32.mrb[0].mxu0
        %v808 = vadd.f32 0.0, %v807
        %v809 = vpop.f32.mrb[0].mxu0
        %v810 = vpop.f32.mrb[0].mxu0
        %v811 = vadd.f32 0.0, %v810
        %v812 = vpop.f32.mrb[0].mxu0
        %813 = vmatprep.mubr.bf16.mxu0 0
        %814 = vmatmul.mubr.bf16.gmra.mrb[0].mxu0 %v606
        %v815 = vpop.f32.mrb[0].mxu0
        %v816 = vadd.f32 0.0, %v815
        %v817 = vpop.f32.mrb[0].mxu0
        %v818 = vpop.f32.mrb[0].mxu0
        %v819 = vadd.f32 0.0, %v818
        %v820 = vpop.f32.mrb[0].mxu0
        %821 = vmatprep.mubr.bf16.mxu0 0
        %822 = vmatmul.mubr.bf16.gmra.mrb[0].mxu0 %v607
        %v823 = vpop.f32.mrb[0].mxu0
        %v824 = vadd.f32 0.0, %v823
        %v825 = vpop.f32.mrb[0].mxu0
        %v826 = vpop.f32.mrb[0].mxu0
        %v827 = vadd.f32 0.0, %v826
        %v828 = vpop.f32.mrb[0].mxu0
        %829 = vmatprep.mubr.bf16.mxu0 0
        %830 = vmatmul.mubr.bf16.gmra.mrb[0].mxu0 %v608
        %v831 = vpop.f32.mrb[0].mxu0
        %v832 = vadd.f32 0.0, %v831
        %v833 = vpop.f32.mrb[0].mxu0
        %v834 = vpop.f32.mrb[0].mxu0
        %v835 = vadd.f32 0.0, %v834
        %v836 = vpop.f32.mrb[0].mxu0
        %837 = vmatprep.mubr.bf16.mxu0 0
        %838 = vmatmul.mubr.bf16.gmra.mrb[0].mxu0 %v609
        %v839 = vpop.f32.mrb[0].mxu0
        %v840 = vadd.f32 0.0, %v839
        %v841 = vpop.f32.mrb[0].mxu0
        %v842 = vpop.f32.mrb[0].mxu0
        %v843 = vadd.f32 0.0, %v842
        %v844 = vpop.f32.mrb[0].mxu0
        %845 = vmatprep.mubr.bf16.mxu0 0
        %846 = vmatmul.mubr.bf16.gmra.mrb[0].mxu0 %v610
        %v847 = vpop.f32.mrb[0].mxu0
        %v848 = vadd.f32 0.0, %v847
        %v849 = vpop.f32.mrb[0].mxu0
        %v850 = vpop.f32.mrb[0].mxu0
        %v851 = vadd.f32 0.0, %v850
        %v852 = vpop.f32.mrb[0].mxu0
        %853 = vmatprep.mubr.bf16.mxu0 0
        %854 = vmatmul.mubr.bf16.gmra.mrb[0].mxu0 %v611
        %v855 = vpop.f32.mrb[0].mxu0
        %v856 = vadd.f32 0.0, %v855
        %v857 = vpop.f32.mrb[0].mxu0
        %v858 = vpop.f32.mrb[0].mxu0
        %v859 = vadd.f32 0.0, %v858
        %v860 = vpop.f32.mrb[0].mxu0
        %861 = vmatprep.mubr.bf16.mxu0 0
        %862 = vmatmul.mubr.bf16.gmra.mrb[0].mxu0 %v612
        %v863 = vpop.f32.mrb[0].mxu0
        %v864 = vadd.f32 0.0, %v863
        %v865 = vpop.f32.mrb[0].mxu0
        %v866 = vpop.f32.mrb[0].mxu0
        %v867 = vadd.f32 0.0, %v866
        %v868 = vpop.f32.mrb[0].mxu0
        %869 = vmatprep.mubr.bf16.mxu0 0
        %870 = vmatmul.mubr.bf16.gmra.mrb[0].mxu0 %v613
        %v871 = vpop.f32.mrb[0].mxu0
        %v872 = vadd.f32 0.0, %v871
        %v873 = vpop.f32.mrb[0].mxu0
        %v874 = vpop.f32.mrb[0].mxu0
        %v875 = vadd.f32 0.0, %v874
        %v876 = vpop.f32.mrb[0].mxu0
        %877 = vmatprep.mubr.bf16.mxu0 0
        %878 = vmatmul.mubr.bf16.gmra.mrb[0].mxu0 %v614
        %v879 = vpop.f32.mrb[0].mxu0
        %v880 = vadd.f32 0.0, %v879
        %v881 = vpop.f32.mrb[0].mxu0
        %v882 = vpop.f32.mrb[0].mxu0
        %v883 = vadd.f32 0.0, %v882
        %v884 = vpop.f32.mrb[0].mxu0
        %885 = vmatprep.mubr.bf16.mxu0 0
        %886 = vmatmul.mubr.bf16.gmra.mrb[0].mxu0 %v615
        %v887 = vpop.f32.mrb[0].mxu0
        %v888 = vadd.f32 0.0, %v887
        %v889 = vpop.f32.mrb[0].mxu0
        %v890 = vpop.f32.mrb[0].mxu0
        %v891 = vadd.f32 0.0, %v890
        %v892 = vpop.f32.mrb[0].mxu0
        %893 = vmatprep.mubr.bf16.mxu0 0
        %894 = vmatmul.mubr.bf16.gmra.mrb[0].mxu0 %v616
        %v895 = vpop.f32.mrb[0].mxu0
        %v896 = vadd.f32 0.0, %v895
        %v897 = vpop.f32.mrb[0].mxu0
        %v898 = vpop.f32.mrb[0].mxu0
        %v899 = vadd.f32 0.0, %v898
        %v900 = vpop.f32.mrb[0].mxu0
        %901 = vmatprep.mubr.bf16.mxu0 0
        %902 = vmatmul.mubr.bf16.gmra.mrb[0].mxu0 %v617
        %v903 = vpop.f32.mrb[0].mxu0
        %v904 = vadd.f32 0.0, %v903
        %v905 = vpop.f32.mrb[0].mxu0
        %v906 = vpop.f32.mrb[0].mxu0
        %v907 = vadd.f32 0.0, %v906
        %v908 = vpop.f32.mrb[0].mxu0
        %909 = vmatprep.mubr.bf16.mxu0 0
        %910 = vmatmul.mubr.bf16.gmra.mrb[0].mxu0 %v618
        %v911 = vpop.f32.mrb[0].mxu0
        %v912 = vadd.f32 0.0, %v911
        %v913 = vpop.f32.mrb[0].mxu0
        %v914 = vpop.f32.mrb[0].mxu0
        %v915 = vadd.f32 0.0, %v914
        %v916 = vpop.f32.mrb[0].mxu0
        %917 = vmatprep.mubr.bf16.mxu0 0
        %918 = vmatmul.mubr.bf16.gmra.mrb[0].mxu0 %v619
        %v919 = vpop.f32.mrb[0].mxu0
        %v920 = vadd.f32 0.0, %v919
        %v921 = vpop.f32.mrb[0].mxu0
        %v922 = vpop.f32.mrb[0].mxu0
        %v923 = vadd.f32 0.0, %v922
        %v924 = vpop.f32.mrb[0].mxu0
        %925 = vmatprep.mubr.bf16.mxu0 0
        %926 = vmatmul.mubr.bf16.gmra.mrb[0].mxu0 %v620
        %v927 = vpop.f32.mrb[0].mxu0
        %v928 = vadd.f32 0.0, %v927
        %v929 = vpop.f32.mrb[0].mxu0
        %v930 = vpop.f32.mrb[0].mxu0
        %v931 = vadd.f32 0.0, %v930
        %v932 = vpop.f32.mrb[0].mxu0
        %933 = vmatprep.mubr.bf16.mxu0 0
        %934 = vmatmul.mubr.bf16.gmra.mrb[0].mxu0 %v621
        %v935 = vpop.f32.mrb[0].mxu0
        %v936 = vadd.f32 0.0, %v935
        %v937 = vpop.f32.mrb[0].mxu0
        %v938 = vpop.f32.mrb[0].mxu0
        %v939 = vadd.f32 0.0, %v938
        %v940 = vpop.f32.mrb[0].mxu0
        %941 = vmatprep.mubr.bf16.mxu0 0
        %942 = vmatmul.mubr.bf16.gmra.mrb[0].mxu0 %v622
        %v943 = vpop.f32.mrb[0].mxu0
        %v944 = vadd.f32 0.0, %v943
        %v945 = vpop.f32.mrb[0].mxu0
        %v946 = vpop.f32.mrb[0].mxu0
        %v947 = vadd.f32 0.0, %v946
        %v948 = vpop.f32.mrb[0].mxu0
        %949 = vmatprep.mubr.bf16.mxu0 0
        %950 = vmatmul.mubr.bf16.gmra.mrb[0].mxu0 %v623
        %v951 = vpop.f32.mrb[0].mxu0
        %v952 = vadd.f32 0.0, %v951
        %v953 = vpop.f32.mrb[0].mxu0
        %v954 = vpop.f32.mrb[0].mxu0
        %v955 = vadd.f32 0.0, %v954
        %v956 = vpop.f32.mrb[0].mxu0
        %957 = vmatprep.mubr.bf16.mxu0 0
        %958 = vmatmul.mubr.bf16.gmra.mrb[0].mxu0 %v624
        %v959 = vpop.f32.mrb[0].mxu0
        %v960 = vadd.f32 0.0, %v959
        %v961 = vpop.f32.mrb[0].mxu0
        %v962 = vpop.f32.mrb[0].mxu0
        %v963 = vadd.f32 0.0, %v962
        %v964 = vpop.f32.mrb[0].mxu0
        %965 = vmatprep.mubr.bf16.mxu0 0
        %966 = vmatmul.mubr.bf16.gmra.mrb[0].mxu0 %v625
        %v967 = vpop.f32.mrb[0].mxu0
        %v968 = vadd.f32 0.0, %v967
        %v969 = vpop.f32.mrb[0].mxu0
        %v970 = vpop.f32.mrb[0].mxu0
        %v971 = vadd.f32 0.0, %v970
        %v972 = vpop.f32.mrb[0].mxu0
        %973 = vmatprep.mubr.bf16.mxu0 0
        %974 = vmatmul.mubr.bf16.gmra.mrb[0].mxu0 %v626
        %v975 = vpop.f32.mrb[0].mxu0
        %v976 = vadd.f32 0.0, %v975
        %v977 = vpop.f32.mrb[0].mxu0
        %v978 = vpop.f32.mrb[0].mxu0
        %v979 = vadd.f32 0.0, %v978
        %v980 = vpop.f32.mrb[0].mxu0
        %981 = vmatprep.mubr.bf16.mxu0 0
        %982 = vmatmul.mubr.bf16.gmra.mrb[0].mxu0 %v627
        %v983 = vpop.f32.mrb[0].mxu0
        %v984 = vadd.f32 0.0, %v983
        %v985 = vpop.f32.mrb[0].mxu0
        %v986 = vpop.f32.mrb[0].mxu0
        %v987 = vadd.f32 0.0, %v986
        %v988 = vpop.f32.mrb[0].mxu0
        %989 = vmatprep.mubr.bf16.mxu0 0
        %990 = vmatmul.mubr.bf16.gmra.mrb[0].mxu0 %v628
        %v991 = vpop.f32.mrb[0].mxu0
        %v992 = vadd.f32 0.0, %v991
        %v993 = vpop.f32.mrb[0].mxu0
        %v994 = vpop.f32.mrb[0].mxu0
        %v995 = vadd.f32 0.0, %v994
        %v996 = vpop.f32.mrb[0].mxu0
        %997 = vdwg.mxu0
        %v998 = vadd.f32 %v325, %v744
        %v999 = vadd.f32 %v326, %v747
        %v1000 = vadd.f32 %v327, %v752
        %v1001 = vadd.f32 %v328, %v755
        %v1002 = vadd.f32 %v329, %v760
        %v1003 = vadd.f32 %v330, %v763
        %v1004 = vadd.f32 %v331, %v768
        %v1005 = vadd.f32 %v332, %v771
        %v1006 = vadd.f32 %v333, %v776
        %v1007 = vadd.f32 %v334, %v779
        %v1008 = vadd.f32 %v335, %v784
        %v1009 = vadd.f32 %v336, %v787
        %v1010 = vadd.f32 %v337, %v792
        %v1011 = vadd.f32 %v338, %v795
        %v1012 = vadd.f32 %v339, %v800
        %v1013 = vadd.f32 %v340, %v803
        %v1014 = vadd.f32 %v341, %v808
        %v1015 = vadd.f32 %v342, %v811
        %v1016 = vadd.f32 %v343, %v816
        %v1017 = vadd.f32 %v344, %v819
        %v1018 = vadd.f32 %v345, %v824
        %v1019 = vadd.f32 %v346, %v827
        %v1020 = vadd.f32 %v347, %v832
        %v1021 = vadd.f32 %v348, %v835
        %v1022 = vadd.f32 %v349, %v840
        %v1023 = vadd.f32 %v350, %v843
        %v1024 = vadd.f32 %v351, %v848
        %v1025 = vadd.f32 %v352, %v851
        %v1026 = vadd.f32 %v353, %v856
        %v1027 = vadd.f32 %v354, %v859
        %v1028 = vadd.f32 %v355, %v864
        %v1029 = vadd.f32 %v356, %v867
        %v1030 = vadd.f32 %v357, %v872
        %v1031 = vadd.f32 %v358, %v875
        %v1032 = vadd.f32 %v359, %v880
        %v1033 = vadd.f32 %v360, %v883
        %v1034 = vadd.f32 %v361, %v888
        %v1035 = vadd.f32 %v362, %v891
        %v1036 = vadd.f32 %v363, %v896
        %v1037 = vadd.f32 %v364, %v899
        %v1038 = vadd.f32 %v365, %v904
        %v1039 = vadd.f32 %v366, %v907
        %v1040 = vadd.f32 %v367, %v912
        %v1041 = vadd.f32 %v368, %v915
        %v1042 = vadd.f32 %v369, %v920
        %v1043 = vadd.f32 %v370, %v923
        %v1044 = vadd.f32 %v371, %v928
        %v1045 = vadd.f32 %v372, %v931
        %v1046 = vadd.f32 %v373, %v936
        %v1047 = vadd.f32 %v374, %v939
        %v1048 = vadd.f32 %v375, %v944
        %v1049 = vadd.f32 %v376, %v947
        %v1050 = vadd.f32 %v377, %v952
        %v1051 = vadd.f32 %v378, %v955
        %v1052 = vadd.f32 %v379, %v960
        %v1053 = vadd.f32 %v380, %v963
        %v1054 = vadd.f32 %v381, %v968
        %v1055 = vadd.f32 %v382, %v971
        %v1056 = vadd.f32 %v383, %v976
        %v1057 = vadd.f32 %v384, %v979
        %v1058 = vadd.f32 %v385, %v984
        %v1059 = vadd.f32 %v386, %v987
        %v1060 = vadd.f32 %v387, %v992
        %v1061 = vadd.f32 %v388, %v995
        %1062 = vst [vmem:[#allocation2] sm:$0xff] %v998
        %1063 = vst [vmem:[#allocation2 + $0x8] sm:$0xff] %v999
        %1064 = vst [vmem:[#allocation2 + $0x10] sm:$0xff] %v1000
        %1065 = vst [vmem:[#allocation2 + $0x18] sm:$0xff] %v1001
        %1066 = vst [vmem:[#allocation2 + $0x20] sm:$0xff] %v1002
        %1067 = vst [vmem:[#allocation2 + $0x28] sm:$0xff] %v1003
        %1068 = vst [vmem:[#allocation2 + $0x30] sm:$0xff] %v1004
        %1069 = vst [vmem:[#allocation2 + $0x38] sm:$0xff] %v1005
        %1070 = vst [vmem:[#allocation2 + $0x40] sm:$0xff] %v1006
        %1071 = vst [vmem:[#allocation2 + $0x48] sm:$0xff] %v1007
        %1072 = vst [vmem:[#allocation2 + $0x50] sm:$0xff] %v1008
        %1073 = vst [vmem:[#allocation2 + $0x58] sm:$0xff] %v1009
        %1074 = vst [vmem:[#allocation2 + $0x60] sm:$0xff] %v1010
        %1075 = vst [vmem:[#allocation2 + $0x68] sm:$0xff] %v1011
        %1076 = vst [vmem:[#allocation2 + $0x70] sm:$0xff] %v1012
        %1077 = vst [vmem:[#allocation2 + $0x78] sm:$0xff] %v1013
        %1078 = vst [vmem:[#allocation2 + $0x80] sm:$0xff] %v1014
        %1079 = vst [vmem:[#allocation2 + $0x88] sm:$0xff] %v1015
        %1080 = vst [vmem:[#allocation2 + $0x90] sm:$0xff] %v1016
        %1081 = vst [vmem:[#allocation2 + $0x98] sm:$0xff] %v1017
        %1082 = vst [vmem:[#allocation2 + $0xa0] sm:$0xff] %v1018
        %1083 = vst [vmem:[#allocation2 + $0xa8] sm:$0xff] %v1019
        %1084 = vst [vmem:[#allocation2 + $0xb0] sm:$0xff] %v1020
        %1085 = vst [vmem:[#allocation2 + $0xb8] sm:$0xff] %v1021
        %1086 = vst [vmem:[#allocation2 + $0xc0] sm:$0xff] %v1022
        %1087 = vst [vmem:[#allocation2 + $0xc8] sm:$0xff] %v1023
        %1088 = vst [vmem:[#allocation2 + $0xd0] sm:$0xff] %v1024
        %1089 = vst [vmem:[#allocation2 + $0xd8] sm:$0xff] %v1025
        %1090 = vst [vmem:[#allocation2 + $0xe0] sm:$0xff] %v1026
        %1091 = vst [vmem:[#allocation2 + $0xe8] sm:$0xff] %v1027
        %1092 = vst [vmem:[#allocation2 + $0xf0] sm:$0xff] %v1028
        %1093 = vst [vmem:[#allocation2 + $0xf8] sm:$0xff] %v1029
        %1094 = vst [vmem:[#allocation2 + $0x100] sm:$0xff] %v1030
        %1095 = vst [vmem:[#allocation2 + $0x108] sm:$0xff] %v1031
        %1096 = vst [vmem:[#allocation2 + $0x110] sm:$0xff] %v1032
        %1097 = vst [vmem:[#allocation2 + $0x118] sm:$0xff] %v1033
        %1098 = vst [vmem:[#allocation2 + $0x120] sm:$0xff] %v1034
        %1099 = vst [vmem:[#allocation2 + $0x128] sm:$0xff] %v1035
        %1100 = vst [vmem:[#allocation2 + $0x130] sm:$0xff] %v1036
        %1101 = vst [vmem:[#allocation2 + $0x138] sm:$0xff] %v1037
        %1102 = vst [vmem:[#allocation2 + $0x140] sm:$0xff] %v1038
        %1103 = vst [vmem:[#allocation2 + $0x148] sm:$0xff] %v1039
        %1104 = vst [vmem:[#allocation2 + $0x150] sm:$0xff] %v1040
        %1105 = vst [vmem:[#allocation2 + $0x158] sm:$0xff] %v1041
        %1106 = vst [vmem:[#allocation2 + $0x160] sm:$0xff] %v1042
        %1107 = vst [vmem:[#allocation2 + $0x168] sm:$0xff] %v1043
        %1108 = vst [vmem:[#allocation2 + $0x170] sm:$0xff] %v1044
        %1109 = vst [vmem:[#allocation2 + $0x178] sm:$0xff] %v1045
        %1110 = vst [vmem:[#allocation2 + $0x180] sm:$0xff] %v1046
        %1111 = vst [vmem:[#allocation2 + $0x188] sm:$0xff] %v1047
        %1112 = vst [vmem:[#allocation2 + $0x190] sm:$0xff] %v1048
        %1113 = vst [vmem:[#allocation2 + $0x198] sm:$0xff] %v1049
        %1114 = vst [vmem:[#allocation2 + $0x1a0] sm:$0xff] %v1050
        %1115 = vst [vmem:[#allocation2 + $0x1a8] sm:$0xff] %v1051
        %1116 = vst [vmem:[#allocation2 + $0x1b0] sm:$0xff] %v1052
        %1117 = vst [vmem:[#allocation2 + $0x1b8] sm:$0xff] %v1053
        %1118 = vst [vmem:[#allocation2 + $0x1c0] sm:$0xff] %v1054
        %1119 = vst [vmem:[#allocation2 + $0x1c8] sm:$0xff] %v1055
        %1120 = vst [vmem:[#allocation2 + $0x1d0] sm:$0xff] %v1056
        %1121 = vst [vmem:[#allocation2 + $0x1d8] sm:$0xff] %v1057
        %1122 = vst [vmem:[#allocation2 + $0x1e0] sm:$0xff] %v1058
        %1123 = vst [vmem:[#allocation2 + $0x1e8] sm:$0xff] %v1059
        %1124 = vst [vmem:[#allocation2 + $0x1f0] sm:$0xff] %v1060
        %1125 = vst [vmem:[#allocation2 + $0x1f8] sm:$0xff] %v1061
        // Predicated region
        $region45: #{tpu_custom_call.1} parent=31 // pred_check
          %p1126 = pneg %p257
        $region46: #{tpu_custom_call.1} parent=31 // pred_check_branch
          %1128 = sbr.rel (%p1126) target = $region48
        $region47: #{tpu_custom_call.1} parent=31 // pred_region
          %v1129 = vld [vmem:[#allocation2] sm:$0xff]
          %v1130 = vld [vmem:[#allocation2 + $0x8] sm:$0xff]
          %v1131 = vld [vmem:[#allocation2 + $0x10] sm:$0xff]
          %v1132 = vld [vmem:[#allocation2 + $0x18] sm:$0xff]
          %v1133 = vld [vmem:[#allocation2 + $0x20] sm:$0xff]
          %v1134 = vld [vmem:[#allocation2 + $0x28] sm:$0xff]
          %v1135 = vld [vmem:[#allocation2 + $0x30] sm:$0xff]
          %v1136 = vld [vmem:[#allocation2 + $0x38] sm:$0xff]
          %v1137 = vld [vmem:[#allocation2 + $0x40] sm:$0xff]
          %v1138 = vld [vmem:[#allocation2 + $0x48] sm:$0xff]
          %v1139 = vld [vmem:[#allocation2 + $0x50] sm:$0xff]
          %v1140 = vld [vmem:[#allocation2 + $0x58] sm:$0xff]
          %v1141 = vld [vmem:[#allocation2 + $0x60] sm:$0xff]
          %v1142 = vld [vmem:[#allocation2 + $0x68] sm:$0xff]
          %v1143 = vld [vmem:[#allocation2 + $0x70] sm:$0xff]
          %v1144 = vld [vmem:[#allocation2 + $0x78] sm:$0xff]
          %v1145 = vld [vmem:[#allocation2 + $0x80] sm:$0xff]
          %v1146 = vld [vmem:[#allocation2 + $0x88] sm:$0xff]
          %v1147 = vld [vmem:[#allocation2 + $0x90] sm:$0xff]
          %v1148 = vld [vmem:[#allocation2 + $0x98] sm:$0xff]
          %v1149 = vld [vmem:[#allocation2 + $0xa0] sm:$0xff]
          %v1150 = vld [vmem:[#allocation2 + $0xa8] sm:$0xff]
          %v1151 = vld [vmem:[#allocation2 + $0xb0] sm:$0xff]
          %v1152 = vld [vmem:[#allocation2 + $0xb8] sm:$0xff]
          %v1153 = vld [vmem:[#allocation2 + $0xc0] sm:$0xff]
          %v1154 = vld [vmem:[#allocation2 + $0xc8] sm:$0xff]
          %v1155 = vld [vmem:[#allocation2 + $0xd0] sm:$0xff]
          %v1156 = vld [vmem:[#allocation2 + $0xd8] sm:$0xff]
          %v1157 = vld [vmem:[#allocation2 + $0xe0] sm:$0xff]
          %v1158 = vld [vmem:[#allocation2 + $0xe8] sm:$0xff]
          %v1159 = vld [vmem:[#allocation2 + $0xf0] sm:$0xff]
          %v1160 = vld [vmem:[#allocation2 + $0xf8] sm:$0xff]
          %v1161 = vld [vmem:[#allocation2 + $0x100] sm:$0xff]
          %v1162 = vld [vmem:[#allocation2 + $0x108] sm:$0xff]
          %v1163 = vld [vmem:[#allocation2 + $0x110] sm:$0xff]
          %v1164 = vld [vmem:[#allocation2 + $0x118] sm:$0xff]
          %v1165 = vld [vmem:[#allocation2 + $0x120] sm:$0xff]
          %v1166 = vld [vmem:[#allocation2 + $0x128] sm:$0xff]
          %v1167 = vld [vmem:[#allocation2 + $0x130] sm:$0xff]
          %v1168 = vld [vmem:[#allocation2 + $0x138] sm:$0xff]
          %v1169 = vld [vmem:[#allocation2 + $0x140] sm:$0xff]
          %v1170 = vld [vmem:[#allocation2 + $0x148] sm:$0xff]
          %v1171 = vld [vmem:[#allocation2 + $0x150] sm:$0xff]
          %v1172 = vld [vmem:[#allocation2 + $0x158] sm:$0xff]
          %v1173 = vld [vmem:[#allocation2 + $0x160] sm:$0xff]
          %v1174 = vld [vmem:[#allocation2 + $0x168] sm:$0xff]
          %v1175 = vld [vmem:[#allocation2 + $0x170] sm:$0xff]
          %v1176 = vld [vmem:[#allocation2 + $0x178] sm:$0xff]
          %v1177 = vld [vmem:[#allocation2 + $0x180] sm:$0xff]
          %v1178 = vld [vmem:[#allocation2 + $0x188] sm:$0xff]
          %v1179 = vld [vmem:[#allocation2 + $0x190] sm:$0xff]
          %v1180 = vld [vmem:[#allocation2 + $0x198] sm:$0xff]
          %v1181 = vld [vmem:[#allocation2 + $0x1a0] sm:$0xff]
          %v1182 = vld [vmem:[#allocation2 + $0x1a8] sm:$0xff]
          %v1183 = vld [vmem:[#allocation2 + $0x1b0] sm:$0xff]
          %v1184 = vld [vmem:[#allocation2 + $0x1b8] sm:$0xff]
          %v1185 = vld [vmem:[#allocation2 + $0x1c0] sm:$0xff]
          %v1186 = vld [vmem:[#allocation2 + $0x1c8] sm:$0xff]
          %v1187 = vld [vmem:[#allocation2 + $0x1d0] sm:$0xff]
          %v1188 = vld [vmem:[#allocation2 + $0x1d8] sm:$0xff]
          %v1189 = vld [vmem:[#allocation2 + $0x1e0] sm:$0xff]
          %v1190 = vld [vmem:[#allocation2 + $0x1e8] sm:$0xff]
          %v1191 = vld [vmem:[#allocation2 + $0x1f0] sm:$0xff]
          %v1192 = vld [vmem:[#allocation2 + $0x1f8] sm:$0xff]
          %v1193 = vld [vmem:[%s254] sm:$0x1]
          %v1195 = vlaneseq
          %v1196 = vshrl.u32 %v1195, 7
          %v1197 = vsub.s32 0, %v1196
          %v1198 = vrot.slane %v1193, %v1197
          %v1200 = vadd.f32 %v1129, %v1198
          %v1201 = vadd.f32 %v1130, %v1198
          %v1202 = vadd.f32 %v1131, %v1198
          %v1203 = vadd.f32 %v1132, %v1198
          %v1204 = vadd.f32 %v1133, %v1198
          %v1205 = vadd.f32 %v1134, %v1198
          %v1206 = vadd.f32 %v1135, %v1198
          %v1207 = vadd.f32 %v1136, %v1198
          %v1208 = vadd.f32 %v1137, %v1198
          %v1209 = vadd.f32 %v1138, %v1198
          %v1210 = vadd.f32 %v1139, %v1198
          %v1211 = vadd.f32 %v1140, %v1198
          %v1212 = vadd.f32 %v1141, %v1198
          %v1213 = vadd.f32 %v1142, %v1198
          %v1214 = vadd.f32 %v1143, %v1198
          %v1215 = vadd.f32 %v1144, %v1198
          %v1216 = vadd.f32 %v1145, %v1198
          %v1217 = vadd.f32 %v1146, %v1198
          %v1218 = vadd.f32 %v1147, %v1198
          %v1219 = vadd.f32 %v1148, %v1198
          %v1220 = vadd.f32 %v1149, %v1198
          %v1221 = vadd.f32 %v1150, %v1198
          %v1222 = vadd.f32 %v1151, %v1198
          %v1223 = vadd.f32 %v1152, %v1198
          %v1224 = vadd.f32 %v1153, %v1198
          %v1225 = vadd.f32 %v1154, %v1198
          %v1226 = vadd.f32 %v1155, %v1198
          %v1227 = vadd.f32 %v1156, %v1198
          %v1228 = vadd.f32 %v1157, %v1198
          %v1229 = vadd.f32 %v1158, %v1198
          %v1230 = vadd.f32 %v1159, %v1198
          %v1231 = vadd.f32 %v1160, %v1198
          %v1232 = vadd.f32 %v1161, %v1198
          %v1233 = vadd.f32 %v1162, %v1198
          %v1234 = vadd.f32 %v1163, %v1198
          %v1235 = vadd.f32 %v1164, %v1198
          %v1236 = vadd.f32 %v1165, %v1198
          %v1237 = vadd.f32 %v1166, %v1198
          %v1238 = vadd.f32 %v1167, %v1198
          %v1239 = vadd.f32 %v1168, %v1198
          %v1240 = vadd.f32 %v1169, %v1198
          %v1241 = vadd.f32 %v1170, %v1198
          %v1242 = vadd.f32 %v1171, %v1198
          %v1243 = vadd.f32 %v1172, %v1198
          %v1244 = vadd.f32 %v1173, %v1198
          %v1245 = vadd.f32 %v1174, %v1198
          %v1246 = vadd.f32 %v1175, %v1198
          %v1247 = vadd.f32 %v1176, %v1198
          %v1248 = vadd.f32 %v1177, %v1198
          %v1249 = vadd.f32 %v1178, %v1198
          %v1250 = vadd.f32 %v1179, %v1198
          %v1251 = vadd.f32 %v1180, %v1198
          %v1252 = vadd.f32 %v1181, %v1198
          %v1253 = vadd.f32 %v1182, %v1198
          %v1254 = vadd.f32 %v1183, %v1198
          %v1255 = vadd.f32 %v1184, %v1198
          %v1256 = vadd.f32 %v1185, %v1198
          %v1257 = vadd.f32 %v1186, %v1198
          %v1258 = vadd.f32 %v1187, %v1198
          %v1259 = vadd.f32 %v1188, %v1198
          %v1260 = vadd.f32 %v1189, %v1198
          %v1261 = vadd.f32 %v1190, %v1198
          %v1262 = vadd.f32 %v1191, %v1198
          %v1263 = vadd.f32 %v1192, %v1198
          %v1264 = vsub.f32 0.0, %v1200
          %v1265 = vsub.f32 0.0, %v1201
          %v1266 = vsub.f32 0.0, %v1202
          %v1267 = vsub.f32 0.0, %v1203
          %v1268 = vsub.f32 0.0, %v1204
          %v1269 = vsub.f32 0.0, %v1205
          %v1270 = vsub.f32 0.0, %v1206
          %v1271 = vsub.f32 0.0, %v1207
          %v1272 = vsub.f32 0.0, %v1208
          %v1273 = vsub.f32 0.0, %v1209
          %v1274 = vsub.f32 0.0, %v1210
          %v1275 = vsub.f32 0.0, %v1211
          %v1276 = vsub.f32 0.0, %v1212
          %v1277 = vsub.f32 0.0, %v1213
          %v1278 = vsub.f32 0.0, %v1214
          %v1279 = vsub.f32 0.0, %v1215
          %v1280 = vsub.f32 0.0, %v1216
          %v1281 = vsub.f32 0.0, %v1217
          %v1282 = vsub.f32 0.0, %v1218
          %v1283 = vsub.f32 0.0, %v1219
          %v1284 = vsub.f32 0.0, %v1220
          %v1285 = vsub.f32 0.0, %v1221
          %v1286 = vsub.f32 0.0, %v1222
          %v1287 = vsub.f32 0.0, %v1223
          %v1288 = vsub.f32 0.0, %v1224
          %v1289 = vsub.f32 0.0, %v1225
          %v1290 = vsub.f32 0.0, %v1226
          %v1291 = vsub.f32 0.0, %v1227
          %v1292 = vsub.f32 0.0, %v1228
          %v1293 = vsub.f32 0.0, %v1229
          %v1294 = vsub.f32 0.0, %v1230
          %v1295 = vsub.f32 0.0, %v1231
          %v1296 = vsub.f32 0.0, %v1232
          %v1297 = vsub.f32 0.0, %v1233
          %v1298 = vsub.f32 0.0, %v1234
          %v1299 = vsub.f32 0.0, %v1235
          %v1300 = vsub.f32 0.0, %v1236
          %v1301 = vsub.f32 0.0, %v1237
          %v1302 = vsub.f32 0.0, %v1238
          %v1303 = vsub.f32 0.0, %v1239
          %v1304 = vsub.f32 0.0, %v1240
          %v1305 = vsub.f32 0.0, %v1241
          %v1306 = vsub.f32 0.0, %v1242
          %v1307 = vsub.f32 0.0, %v1243
          %v1308 = vsub.f32 0.0, %v1244
          %v1309 = vsub.f32 0.0, %v1245
          %v1310 = vsub.f32 0.0, %v1246
          %v1311 = vsub.f32 0.0, %v1247
          %v1312 = vsub.f32 0.0, %v1248
          %v1313 = vsub.f32 0.0, %v1249
          %v1314 = vsub.f32 0.0, %v1250
          %v1315 = vsub.f32 0.0, %v1251
          %v1316 = vsub.f32 0.0, %v1252
          %v1317 = vsub.f32 0.0, %v1253
          %v1318 = vsub.f32 0.0, %v1254
          %v1319 = vsub.f32 0.0, %v1255
          %v1320 = vsub.f32 0.0, %v1256
          %v1321 = vsub.f32 0.0, %v1257
          %v1322 = vsub.f32 0.0, %v1258
          %v1323 = vsub.f32 0.0, %v1259
          %v1324 = vsub.f32 0.0, %v1260
          %v1325 = vsub.f32 0.0, %v1261
          %v1326 = vsub.f32 0.0, %v1262
          %v1327 = vsub.f32 0.0, %v1263
          %v1328 = vmul.f32 %v1264, 1.442695
          %v1329 = vpow.pop %v1328
          %v1330 = vmul.f32 %v1265, 1.442695
          %v1331 = vpow.pop %v1330
          %v1332 = vmul.f32 %v1266, 1.442695
          %v1333 = vpow.pop %v1332
          %v1334 = vmul.f32 %v1267, 1.442695
          %v1335 = vpow.pop %v1334
          %v1336 = vmul.f32 %v1268, 1.442695
          %v1337 = vpow.pop %v1336
          %v1338 = vmul.f32 %v1269, 1.442695
          %v1339 = vpow.pop %v1338
          %v1340 = vmul.f32 %v1270, 1.442695
          %v1341 = vpow.pop %v1340
          %v1342 = vmul.f32 %v1271, 1.442695
          %v1343 = vpow.pop %v1342
          %v1344 = vmul.f32 %v1272, 1.442695
          %v1345 = vpow.pop %v1344
          %v1346 = vmul.f32 %v1273, 1.442695
          %v1347 = vpow.pop %v1346
          %v1348 = vmul.f32 %v1274, 1.442695
          %v1349 = vpow.pop %v1348
          %v1350 = vmul.f32 %v1275, 1.442695
          %v1351 = vpow.pop %v1350
          %v1352 = vmul.f32 %v1276, 1.442695
          %v1353 = vpow.pop %v1352
          %v1354 = vmul.f32 %v1277, 1.442695
          %v1355 = vpow.pop %v1354
          %v1356 = vmul.f32 %v1278, 1.442695
          %v1357 = vpow.pop %v1356
          %v1358 = vmul.f32 %v1279, 1.442695
          %v1359 = vpow.pop %v1358
          %v1360 = vmul.f32 %v1280, 1.442695
          %v1361 = vpow.pop %v1360
          %v1362 = vmul.f32 %v1281, 1.442695
          %v1363 = vpow.pop %v1362
          %v1364 = vmul.f32 %v1282, 1.442695
          %v1365 = vpow.pop %v1364
          %v1366 = vmul.f32 %v1283, 1.442695
          %v1367 = vpow.pop %v1366
          %v1368 = vmul.f32 %v1284, 1.442695
          %v1369 = vpow.pop %v1368
          %v1370 = vmul.f32 %v1285, 1.442695
          %v1371 = vpow.pop %v1370
          %v1372 = vmul.f32 %v1286, 1.442695
          %v1373 = vpow.pop %v1372
          %v1374 = vmul.f32 %v1287, 1.442695
          %v1375 = vpow.pop %v1374
          %v1376 = vmul.f32 %v1288, 1.442695
          %v1377 = vpow.pop %v1376
          %v1378 = vmul.f32 %v1289, 1.442695
          %v1379 = vpow.pop %v1378
          %v1380 = vmul.f32 %v1290, 1.442695
          %v1381 = vpow.pop %v1380
          %v1382 = vmul.f32 %v1291, 1.442695
          %v1383 = vpow.pop %v1382
          %v1384 = vmul.f32 %v1292, 1.442695
          %v1385 = vpow.pop %v1384
          %v1386 = vmul.f32 %v1293, 1.442695
          %v1387 = vpow.pop %v1386
          %v1388 = vmul.f32 %v1294, 1.442695
          %v1389 = vpow.pop %v1388
          %v1390 = vmul.f32 %v1295, 1.442695
          %v1391 = vpow.pop %v1390
          %v1392 = vmul.f32 %v1296, 1.442695
          %v1393 = vpow.pop %v1392
          %v1394 = vmul.f32 %v1297, 1.442695
          %v1395 = vpow.pop %v1394
          %v1396 = vmul.f32 %v1298, 1.442695
          %v1397 = vpow.pop %v1396
          %v1398 = vmul.f32 %v1299, 1.442695
          %v1399 = vpow.pop %v1398
          %v1400 = vmul.f32 %v1300, 1.442695
          %v1401 = vpow.pop %v1400
          %v1402 = vmul.f32 %v1301, 1.442695
          %v1403 = vpow.pop %v1402
          %v1404 = vmul.f32 %v1302, 1.442695
          %v1405 = vpow.pop %v1404
          %v1406 = vmul.f32 %v1303, 1.442695
          %v1407 = vpow.pop %v1406
          %v1408 = vmul.f32 %v1304, 1.442695
          %v1409 = vpow.pop %v1408
          %v1410 = vmul.f32 %v1305, 1.442695
          %v1411 = vpow.pop %v1410
          %v1412 = vmul.f32 %v1306, 1.442695
          %v1413 = vpow.pop %v1412
          %v1414 = vmul.f32 %v1307, 1.442695
          %v1415 = vpow.pop %v1414
          %v1416 = vmul.f32 %v1308, 1.442695
          %v1417 = vpow.pop %v1416
          %v1418 = vmul.f32 %v1309, 1.442695
          %v1419 = vpow.pop %v1418
          %v1420 = vmul.f32 %v1310, 1.442695
          %v1421 = vpow.pop %v1420
          %v1422 = vmul.f32 %v1311, 1.442695
          %v1423 = vpow.pop %v1422
          %v1424 = vmul.f32 %v1312, 1.442695
          %v1425 = vpow.pop %v1424
          %v1426 = vmul.f32 %v1313, 1.442695
          %v1427 = vpow.pop %v1426
          %v1428 = vmul.f32 %v1314, 1.442695
          %v1429 = vpow.pop %v1428
          %v1430 = vmul.f32 %v1315, 1.442695
          %v1431 = vpow.pop %v1430
          %v1432 = vmul.f32 %v1316, 1.442695
          %v1433 = vpow.pop %v1432
          %v1434 = vmul.f32 %v1317, 1.442695
          %v1435 = vpow.pop %v1434
          %v1436 = vmul.f32 %v1318, 1.442695
          %v1437 = vpow.pop %v1436
          %v1438 = vmul.f32 %v1319, 1.442695
          %v1439 = vpow.pop %v1438
          %v1440 = vmul.f32 %v1320, 1.442695
          %v1441 = vpow.pop %v1440
          %v1442 = vmul.f32 %v1321, 1.442695
          %v1443 = vpow.pop %v1442
          %v1444 = vmul.f32 %v1322, 1.442695
          %v1445 = vpow.pop %v1444
          %v1446 = vmul.f32 %v1323, 1.442695
          %v1447 = vpow.pop %v1446
          %v1448 = vmul.f32 %v1324, 1.442695
          %v1449 = vpow.pop %v1448
          %v1450 = vmul.f32 %v1325, 1.442695
          %v1451 = vpow.pop %v1450
          %v1452 = vmul.f32 %v1326, 1.442695
          %v1453 = vpow.pop %v1452
          %v1454 = vmul.f32 %v1327, 1.442695
          %v1455 = vpow.pop %v1454
          %v1456 = vadd.f32 %v1329, 1.0
          %v1457 = vadd.f32 %v1331, 1.0
          %v1458 = vadd.f32 %v1333, 1.0
          %v1459 = vadd.f32 %v1335, 1.0
          %v1460 = vadd.f32 %v1337, 1.0
          %v1461 = vadd.f32 %v1339, 1.0
          %v1462 = vadd.f32 %v1341, 1.0
          %v1463 = vadd.f32 %v1343, 1.0
          %v1464 = vadd.f32 %v1345, 1.0
          %v1465 = vadd.f32 %v1347, 1.0
          %v1466 = vadd.f32 %v1349, 1.0
          %v1467 = vadd.f32 %v1351, 1.0
          %v1468 = vadd.f32 %v1353, 1.0
          %v1469 = vadd.f32 %v1355, 1.0
          %v1470 = vadd.f32 %v1357, 1.0
          %v1471 = vadd.f32 %v1359, 1.0
          %v1472 = vadd.f32 %v1361, 1.0
          %v1473 = vadd.f32 %v1363, 1.0
          %v1474 = vadd.f32 %v1365, 1.0
          %v1475 = vadd.f32 %v1367, 1.0
          %v1476 = vadd.f32 %v1369, 1.0
          %v1477 = vadd.f32 %v1371, 1.0
          %v1478 = vadd.f32 %v1373, 1.0
          %v1479 = vadd.f32 %v1375, 1.0
          %v1480 = vadd.f32 %v1377, 1.0
          %v1481 = vadd.f32 %v1379, 1.0
          %v1482 = vadd.f32 %v1381, 1.0
          %v1483 = vadd.f32 %v1383, 1.0
          %v1484 = vadd.f32 %v1385, 1.0
          %v1485 = vadd.f32 %v1387, 1.0
          %v1486 = vadd.f32 %v1389, 1.0
          %v1487 = vadd.f32 %v1391, 1.0
          %v1488 = vadd.f32 %v1393, 1.0
          %v1489 = vadd.f32 %v1395, 1.0
          %v1490 = vadd.f32 %v1397, 1.0
          %v1491 = vadd.f32 %v1399, 1.0
          %v1492 = vadd.f32 %v1401, 1.0
          %v1493 = vadd.f32 %v1403, 1.0
          %v1494 = vadd.f32 %v1405, 1.0
          %v1495 = vadd.f32 %v1407, 1.0
          %v1496 = vadd.f32 %v1409, 1.0
          %v1497 = vadd.f32 %v1411, 1.0
          %v1498 = vadd.f32 %v1413, 1.0
          %v1499 = vadd.f32 %v1415, 1.0
          %v1500 = vadd.f32 %v1417, 1.0
          %v1501 = vadd.f32 %v1419, 1.0
          %v1502 = vadd.f32 %v1421, 1.0
          %v1503 = vadd.f32 %v1423, 1.0
          %v1504 = vadd.f32 %v1425, 1.0
          %v1505 = vadd.f32 %v1427, 1.0
          %v1506 = vadd.f32 %v1429, 1.0
          %v1507 = vadd.f32 %v1431, 1.0
          %v1508 = vadd.f32 %v1433, 1.0
          %v1509 = vadd.f32 %v1435, 1.0
          %v1510 = vadd.f32 %v1437, 1.0
          %v1511 = vadd.f32 %v1439, 1.0
          %v1512 = vadd.f32 %v1441, 1.0
          %v1513 = vadd.f32 %v1443, 1.0
          %v1514 = vadd.f32 %v1445, 1.0
          %v1515 = vadd.f32 %v1447, 1.0
          %v1516 = vadd.f32 %v1449, 1.0
          %v1517 = vadd.f32 %v1451, 1.0
          %v1518 = vadd.f32 %v1453, 1.0
          %v1519 = vadd.f32 %v1455, 1.0
          %v1520 = vrcp.pop %v1456
          %v1521 = vmul.f32 1.0, %v1520
          %v1522 = vrcp.pop %v1457
          %v1523 = vmul.f32 1.0, %v1522
          %v1524 = vrcp.pop %v1458
          %v1525 = vmul.f32 1.0, %v1524
          %v1526 = vrcp.pop %v1459
          %v1527 = vmul.f32 1.0, %v1526
          %v1528 = vrcp.pop %v1460
          %v1529 = vmul.f32 1.0, %v1528
          %v1530 = vrcp.pop %v1461
          %v1531 = vmul.f32 1.0, %v1530
          %v1532 = vrcp.pop %v1462
          %v1533 = vmul.f32 1.0, %v1532
          %v1534 = vrcp.pop %v1463
          %v1535 = vmul.f32 1.0, %v1534
          %v1536 = vrcp.pop %v1464
          %v1537 = vmul.f32 1.0, %v1536
          %v1538 = vrcp.pop %v1465
          %v1539 = vmul.f32 1.0, %v1538
          %v1540 = vrcp.pop %v1466
          %v1541 = vmul.f32 1.0, %v1540
          %v1542 = vrcp.pop %v1467
          %v1543 = vmul.f32 1.0, %v1542
          %v1544 = vrcp.pop %v1468
          %v1545 = vmul.f32 1.0, %v1544
          %v1546 = vrcp.pop %v1469
          %v1547 = vmul.f32 1.0, %v1546
          %v1548 = vrcp.pop %v1470
          %v1549 = vmul.f32 1.0, %v1548
          %v1550 = vrcp.pop %v1471
          %v1551 = vmul.f32 1.0, %v1550
          %v1552 = vrcp.pop %v1472
          %v1553 = vmul.f32 1.0, %v1552
          %v1554 = vrcp.pop %v1473
          %v1555 = vmul.f32 1.0, %v1554
          %v1556 = vrcp.pop %v1474
          %v1557 = vmul.f32 1.0, %v1556
          %v1558 = vrcp.pop %v1475
          %v1559 = vmul.f32 1.0, %v1558
          %v1560 = vrcp.pop %v1476
          %v1561 = vmul.f32 1.0, %v1560
          %v1562 = vrcp.pop %v1477
          %v1563 = vmul.f32 1.0, %v1562
          %v1564 = vrcp.pop %v1478
          %v1565 = vmul.f32 1.0, %v1564
          %v1566 = vrcp.pop %v1479
          %v1567 = vmul.f32 1.0, %v1566
          %v1568 = vrcp.pop %v1480
          %v1569 = vmul.f32 1.0, %v1568
          %v1570 = vrcp.pop %v1481
          %v1571 = vmul.f32 1.0, %v1570
          %v1572 = vrcp.pop %v1482
          %v1573 = vmul.f32 1.0, %v1572
          %v1574 = vrcp.pop %v1483
          %v1575 = vmul.f32 1.0, %v1574
          %v1576 = vrcp.pop %v1484
          %v1577 = vmul.f32 1.0, %v1576
          %v1578 = vrcp.pop %v1485
          %v1579 = vmul.f32 1.0, %v1578
          %v1580 = vrcp.pop %v1486
          %v1581 = vmul.f32 1.0, %v1580
          %v1582 = vrcp.pop %v1487
          %v1583 = vmul.f32 1.0, %v1582
          %v1584 = vrcp.pop %v1488
          %v1585 = vmul.f32 1.0, %v1584
          %v1586 = vrcp.pop %v1489
          %v1587 = vmul.f32 1.0, %v1586
          %v1588 = vrcp.pop %v1490
          %v1589 = vmul.f32 1.0, %v1588
          %v1590 = vrcp.pop %v1491
          %v1591 = vmul.f32 1.0, %v1590
          %v1592 = vrcp.pop %v1492
          %v1593 = vmul.f32 1.0, %v1592
          %v1594 = vrcp.pop %v1493
          %v1595 = vmul.f32 1.0, %v1594
          %v1596 = vrcp.pop %v1494
          %v1597 = vmul.f32 1.0, %v1596
          %v1598 = vrcp.pop %v1495
          %v1599 = vmul.f32 1.0, %v1598
          %v1600 = vrcp.pop %v1496
          %v1601 = vmul.f32 1.0, %v1600
          %v1602 = vrcp.pop %v1497
          %v1603 = vmul.f32 1.0, %v1602
          %v1604 = vrcp.pop %v1498
          %v1605 = vmul.f32 1.0, %v1604
          %v1606 = vrcp.pop %v1499
          %v1607 = vmul.f32 1.0, %v1606
          %v1608 = vrcp.pop %v1500
          %v1609 = vmul.f32 1.0, %v1608
          %v1610 = vrcp.pop %v1501
          %v1611 = vmul.f32 1.0, %v1610
          %v1612 = vrcp.pop %v1502
          %v1613 = vmul.f32 1.0, %v1612
          %v1614 = vrcp.pop %v1503
          %v1615 = vmul.f32 1.0, %v1614
          %v1616 = vrcp.pop %v1504
          %v1617 = vmul.f32 1.0, %v1616
          %v1618 = vrcp.pop %v1505
          %v1619 = vmul.f32 1.0, %v1618
          %v1620 = vrcp.pop %v1506
          %v1621 = vmul.f32 1.0, %v1620
          %v1622 = vrcp.pop %v1507
          %v1623 = vmul.f32 1.0, %v1622
          %v1624 = vrcp.pop %v1508
          %v1625 = vmul.f32 1.0, %v1624
          %v1626 = vrcp.pop %v1509
          %v1627 = vmul.f32 1.0, %v1626
          %v1628 = vrcp.pop %v1510
          %v1629 = vmul.f32 1.0, %v1628
          %v1630 = vrcp.pop %v1511
          %v1631 = vmul.f32 1.0, %v1630
          %v1632 = vrcp.pop %v1512
          %v1633 = vmul.f32 1.0, %v1632
          %v1634 = vrcp.pop %v1513
          %v1635 = vmul.f32 1.0, %v1634
          %v1636 = vrcp.pop %v1514
          %v1637 = vmul.f32 1.0, %v1636
          %v1638 = vrcp.pop %v1515
          %v1639 = vmul.f32 1.0, %v1638
          %v1640 = vrcp.pop %v1516
          %v1641 = vmul.f32 1.0, %v1640
          %v1642 = vrcp.pop %v1517
          %v1643 = vmul.f32 1.0, %v1642
          %v1644 = vrcp.pop %v1518
          %v1645 = vmul.f32 1.0, %v1644
          %v1646 = vrcp.pop %v1519
          %v1647 = vmul.f32 1.0, %v1646
          %v1648 = vmul.f32 %v1200, %v1521
          %v1649 = vmul.f32 %v1201, %v1523
          %v1650 = vmul.f32 %v1202, %v1525
          %v1651 = vmul.f32 %v1203, %v1527
          %v1652 = vmul.f32 %v1204, %v1529
          %v1653 = vmul.f32 %v1205, %v1531
          %v1654 = vmul.f32 %v1206, %v1533
          %v1655 = vmul.f32 %v1207, %v1535
          %v1656 = vmul.f32 %v1208, %v1537
          %v1657 = vmul.f32 %v1209, %v1539
          %v1658 = vmul.f32 %v1210, %v1541
          %v1659 = vmul.f32 %v1211, %v1543
          %v1660 = vmul.f32 %v1212, %v1545
          %v1661 = vmul.f32 %v1213, %v1547
          %v1662 = vmul.f32 %v1214, %v1549
          %v1663 = vmul.f32 %v1215, %v1551
          %v1664 = vmul.f32 %v1216, %v1553
          %v1665 = vmul.f32 %v1217, %v1555
          %v1666 = vmul.f32 %v1218, %v1557
          %v1667 = vmul.f32 %v1219, %v1559
          %v1668 = vmul.f32 %v1220, %v1561
          %v1669 = vmul.f32 %v1221, %v1563
          %v1670 = vmul.f32 %v1222, %v1565
          %v1671 = vmul.f32 %v1223, %v1567
          %v1672 = vmul.f32 %v1224, %v1569
          %v1673 = vmul.f32 %v1225, %v1571
          %v1674 = vmul.f32 %v1226, %v1573
          %v1675 = vmul.f32 %v1227, %v1575
          %v1676 = vmul.f32 %v1228, %v1577
          %v1677 = vmul.f32 %v1229, %v1579
          %v1678 = vmul.f32 %v1230, %v1581
          %v1679 = vmul.f32 %v1231, %v1583
          %v1680 = vmul.f32 %v1232, %v1585
          %v1681 = vmul.f32 %v1233, %v1587
          %v1682 = vmul.f32 %v1234, %v1589
          %v1683 = vmul.f32 %v1235, %v1591
          %v1684 = vmul.f32 %v1236, %v1593
          %v1685 = vmul.f32 %v1237, %v1595
          %v1686 = vmul.f32 %v1238, %v1597
          %v1687 = vmul.f32 %v1239, %v1599
          %v1688 = vmul.f32 %v1240, %v1601
          %v1689 = vmul.f32 %v1241, %v1603
          %v1690 = vmul.f32 %v1242, %v1605
          %v1691 = vmul.f32 %v1243, %v1607
          %v1692 = vmul.f32 %v1244, %v1609
          %v1693 = vmul.f32 %v1245, %v1611
          %v1694 = vmul.f32 %v1246, %v1613
          %v1695 = vmul.f32 %v1247, %v1615
          %v1696 = vmul.f32 %v1248, %v1617
          %v1697 = vmul.f32 %v1249, %v1619
          %v1698 = vmul.f32 %v1250, %v1621
          %v1699 = vmul.f32 %v1251, %v1623
          %v1700 = vmul.f32 %v1252, %v1625
          %v1701 = vmul.f32 %v1253, %v1627
          %v1702 = vmul.f32 %v1254, %v1629
          %v1703 = vmul.f32 %v1255, %v1631
          %v1704 = vmul.f32 %v1256, %v1633
          %v1705 = vmul.f32 %v1257, %v1635
          %v1706 = vmul.f32 %v1258, %v1637
          %v1707 = vmul.f32 %v1259, %v1639
          %v1708 = vmul.f32 %v1260, %v1641
          %v1709 = vmul.f32 %v1261, %v1643
          %v1710 = vmul.f32 %v1262, %v1645
          %v1711 = vmul.f32 %v1263, %v1647
          %v1712 = vpack.c.bf16 %v1649, %v1648
          %v1713 = vpack.c.bf16 %v1651, %v1650
          %v1714 = vpack.c.bf16 %v1653, %v1652
          %v1715 = vpack.c.bf16 %v1655, %v1654
          %v1716 = vpack.c.bf16 %v1657, %v1656
          %v1717 = vpack.c.bf16 %v1659, %v1658
          %v1718 = vpack.c.bf16 %v1661, %v1660
          %v1719 = vpack.c.bf16 %v1663, %v1662
          %v1720 = vpack.c.bf16 %v1665, %v1664
          %v1721 = vpack.c.bf16 %v1667, %v1666
          %v1722 = vpack.c.bf16 %v1669, %v1668
          %v1723 = vpack.c.bf16 %v1671, %v1670
          %v1724 = vpack.c.bf16 %v1673, %v1672
          %v1725 = vpack.c.bf16 %v1675, %v1674
          %v1726 = vpack.c.bf16 %v1677, %v1676
          %v1727 = vpack.c.bf16 %v1679, %v1678
          %v1728 = vpack.c.bf16 %v1681, %v1680
          %v1729 = vpack.c.bf16 %v1683, %v1682
          %v1730 = vpack.c.bf16 %v1685, %v1684
          %v1731 = vpack.c.bf16 %v1687, %v1686
          %v1732 = vpack.c.bf16 %v1689, %v1688
          %v1733 = vpack.c.bf16 %v1691, %v1690
          %v1734 = vpack.c.bf16 %v1693, %v1692
          %v1735 = vpack.c.bf16 %v1695, %v1694
          %v1736 = vpack.c.bf16 %v1697, %v1696
          %v1737 = vpack.c.bf16 %v1699, %v1698
          %v1738 = vpack.c.bf16 %v1701, %v1700
          %v1739 = vpack.c.bf16 %v1703, %v1702
          %v1740 = vpack.c.bf16 %v1705, %v1704
          %v1741 = vpack.c.bf16 %v1707, %v1706
          %v1742 = vpack.c.bf16 %v1709, %v1708
          %v1743 = vpack.c.bf16 %v1711, %v1710
          %v1776 = vunpack.c.l.b16 %v1712
          %v1777 = vunpack.c.h.b16 %v1712
          %v1778 = vunpack.c.l.b16 %v1713
          %v1779 = vunpack.c.h.b16 %v1713
          %v1780 = vunpack.c.l.b16 %v1714
          %v1781 = vunpack.c.h.b16 %v1714
          %v1782 = vunpack.c.l.b16 %v1715
          %v1783 = vunpack.c.h.b16 %v1715
          %v1784 = vunpack.c.l.b16 %v1716
          %v1785 = vunpack.c.h.b16 %v1716
          %v1786 = vunpack.c.l.b16 %v1717
          %v1787 = vunpack.c.h.b16 %v1717
          %v1788 = vunpack.c.l.b16 %v1718
          %v1789 = vunpack.c.h.b16 %v1718
          %v1790 = vunpack.c.l.b16 %v1719
          %v1791 = vunpack.c.h.b16 %v1719
          %v1792 = vunpack.c.l.b16 %v1720
          %v1793 = vunpack.c.h.b16 %v1720
          %v1794 = vunpack.c.l.b16 %v1721
          %v1795 = vunpack.c.h.b16 %v1721
          %v1796 = vunpack.c.l.b16 %v1722
          %v1797 = vunpack.c.h.b16 %v1722
          %v1798 = vunpack.c.l.b16 %v1723
          %v1799 = vunpack.c.h.b16 %v1723
          %v1800 = vunpack.c.l.b16 %v1724
          %v1801 = vunpack.c.h.b16 %v1724
          %v1802 = vunpack.c.l.b16 %v1725
          %v1803 = vunpack.c.h.b16 %v1725
          %v1804 = vunpack.c.l.b16 %v1726
          %v1805 = vunpack.c.h.b16 %v1726
          %v1806 = vunpack.c.l.b16 %v1727
          %v1807 = vunpack.c.h.b16 %v1727
          %v1808 = vunpack.c.l.b16 %v1728
          %v1809 = vunpack.c.h.b16 %v1728
          %v1810 = vunpack.c.l.b16 %v1729
          %v1811 = vunpack.c.h.b16 %v1729
          %v1812 = vunpack.c.l.b16 %v1730
          %v1813 = vunpack.c.h.b16 %v1730
          %v1814 = vunpack.c.l.b16 %v1731
          %v1815 = vunpack.c.h.b16 %v1731
          %v1816 = vunpack.c.l.b16 %v1732
          %v1817 = vunpack.c.h.b16 %v1732
          %v1818 = vunpack.c.l.b16 %v1733
          %v1819 = vunpack.c.h.b16 %v1733
          %v1820 = vunpack.c.l.b16 %v1734
          %v1821 = vunpack.c.h.b16 %v1734
          %v1822 = vunpack.c.l.b16 %v1735
          %v1823 = vunpack.c.h.b16 %v1735
          %v1824 = vunpack.c.l.b16 %v1736
          %v1825 = vunpack.c.h.b16 %v1736
          %v1826 = vunpack.c.l.b16 %v1737
          %v1827 = vunpack.c.h.b16 %v1737
          %v1828 = vunpack.c.l.b16 %v1738
          %v1829 = vunpack.c.h.b16 %v1738
          %v1830 = vunpack.c.l.b16 %v1739
          %v1831 = vunpack.c.h.b16 %v1739
          %v1832 = vunpack.c.l.b16 %v1740
          %v1833 = vunpack.c.h.b16 %v1740
          %v1834 = vunpack.c.l.b16 %v1741
          %v1835 = vunpack.c.h.b16 %v1741
          %v1836 = vunpack.c.l.b16 %v1742
          %v1837 = vunpack.c.h.b16 %v1742
          %v1838 = vunpack.c.l.b16 %v1743
          %v1839 = vunpack.c.h.b16 %v1743
          %v1840 = vpack.c.b16 %v1776, %v1776
          %v1841 = vpack.c.b16 %v1777, %v1777
          %v1842 = vpack.c.b16 %v1778, %v1778
          %v1843 = vpack.c.b16 %v1779, %v1779
          %v1844 = vpack.c.b16 %v1780, %v1780
          %v1845 = vpack.c.b16 %v1781, %v1781
          %v1846 = vpack.c.b16 %v1782, %v1782
          %v1847 = vpack.c.b16 %v1783, %v1783
          %v1848 = vpack.c.b16 %v1784, %v1784
          %v1849 = vpack.c.b16 %v1785, %v1785
          %v1850 = vpack.c.b16 %v1786, %v1786
          %v1851 = vpack.c.b16 %v1787, %v1787
          %v1852 = vpack.c.b16 %v1788, %v1788
          %v1853 = vpack.c.b16 %v1789, %v1789
          %v1854 = vpack.c.b16 %v1790, %v1790
          %v1855 = vpack.c.b16 %v1791, %v1791
          %v1856 = vpack.c.b16 %v1792, %v1792
          %v1857 = vpack.c.b16 %v1793, %v1793
          %v1858 = vpack.c.b16 %v1794, %v1794
          %v1859 = vpack.c.b16 %v1795, %v1795
          %v1860 = vpack.c.b16 %v1796, %v1796
          %v1861 = vpack.c.b16 %v1797, %v1797
          %v1862 = vpack.c.b16 %v1798, %v1798
          %v1863 = vpack.c.b16 %v1799, %v1799
          %v1864 = vpack.c.b16 %v1800, %v1800
          %v1865 = vpack.c.b16 %v1801, %v1801
          %v1866 = vpack.c.b16 %v1802, %v1802
          %v1867 = vpack.c.b16 %v1803, %v1803
          %v1868 = vpack.c.b16 %v1804, %v1804
          %v1869 = vpack.c.b16 %v1805, %v1805
          %v1870 = vpack.c.b16 %v1806, %v1806
          %v1871 = vpack.c.b16 %v1807, %v1807
          %v1872 = vpack.c.b16 %v1808, %v1808
          %v1873 = vpack.c.b16 %v1809, %v1809
          %v1874 = vpack.c.b16 %v1810, %v1810
          %v1875 = vpack.c.b16 %v1811, %v1811
          %v1876 = vpack.c.b16 %v1812, %v1812
          %v1877 = vpack.c.b16 %v1813, %v1813
          %v1878 = vpack.c.b16 %v1814, %v1814
          %v1879 = vpack.c.b16 %v1815, %v1815
          %v1880 = vpack.c.b16 %v1816, %v1816
          %v1881 = vpack.c.b16 %v1817, %v1817
          %v1882 = vpack.c.b16 %v1818, %v1818
          %v1883 = vpack.c.b16 %v1819, %v1819
          %v1884 = vpack.c.b16 %v1820, %v1820
          %v1885 = vpack.c.b16 %v1821, %v1821
          %v1886 = vpack.c.b16 %v1822, %v1822
          %v1887 = vpack.c.b16 %v1823, %v1823
          %v1888 = vpack.c.b16 %v1824, %v1824
          %v1889 = vpack.c.b16 %v1825, %v1825
          %v1890 = vpack.c.b16 %v1826, %v1826
          %v1891 = vpack.c.b16 %v1827, %v1827
          %v1892 = vpack.c.b16 %v1828, %v1828
          %v1893 = vpack.c.b16 %v1829, %v1829
          %v1894 = vpack.c.b16 %v1830, %v1830
          %v1895 = vpack.c.b16 %v1831, %v1831
          %v1896 = vpack.c.b16 %v1832, %v1832
          %v1897 = vpack.c.b16 %v1833, %v1833
          %v1898 = vpack.c.b16 %v1834, %v1834
          %v1899 = vpack.c.b16 %v1835, %v1835
          %v1900 = vpack.c.b16 %v1836, %v1836
          %v1901 = vpack.c.b16 %v1837, %v1837
          %v1902 = vpack.c.b16 %v1838, %v1838
          %v1903 = vpack.c.b16 %v1839, %v1839
          %1968 = vst [vmem:[%s249] sm:$0xf] %v1840
          %1969 = vst [vmem:[%s249 + $0x4] sm:$0xf] %v1841
          %1970 = vst [vmem:[%s249 + $0x8] sm:$0xf] %v1842
          %1971 = vst [vmem:[%s249 + $0xc] sm:$0xf] %v1843
          %1972 = vst [vmem:[%s249 + $0x10] sm:$0xf] %v1844
          %1973 = vst [vmem:[%s249 + $0x14] sm:$0xf] %v1845
          %1974 = vst [vmem:[%s249 + $0x18] sm:$0xf] %v1846
          %1975 = vst [vmem:[%s249 + $0x1c] sm:$0xf] %v1847
          %1976 = vst [vmem:[%s249 + $0x20] sm:$0xf] %v1848
          %1977 = vst [vmem:[%s249 + $0x24] sm:$0xf] %v1849
          %1978 = vst [vmem:[%s249 + $0x28] sm:$0xf] %v1850
          %1979 = vst [vmem:[%s249 + $0x2c] sm:$0xf] %v1851
          %1980 = vst [vmem:[%s249 + $0x30] sm:$0xf] %v1852
          %1981 = vst [vmem:[%s249 + $0x34] sm:$0xf] %v1853
          %1982 = vst [vmem:[%s249 + $0x38] sm:$0xf] %v1854
          %1983 = vst [vmem:[%s249 + $0x3c] sm:$0xf] %v1855
          %1984 = vst [vmem:[%s249 + $0x40] sm:$0xf] %v1856
          %1985 = vst [vmem:[%s249 + $0x44] sm:$0xf] %v1857
          %1986 = vst [vmem:[%s249 + $0x48] sm:$0xf] %v1858
          %1987 = vst [vmem:[%s249 + $0x4c] sm:$0xf] %v1859
          %1988 = vst [vmem:[%s249 + $0x50] sm:$0xf] %v1860
          %1989 = vst [vmem:[%s249 + $0x54] sm:$0xf] %v1861
          %1990 = vst [vmem:[%s249 + $0x58] sm:$0xf] %v1862
          %1991 = vst [vmem:[%s249 + $0x5c] sm:$0xf] %v1863
          %1992 = vst [vmem:[%s249 + $0x60] sm:$0xf] %v1864
          %1993 = vst [vmem:[%s249 + $0x64] sm:$0xf] %v1865
          %1994 = vst [vmem:[%s249 + $0x68] sm:$0xf] %v1866
          %1995 = vst [vmem:[%s249 + $0x6c] sm:$0xf] %v1867
          %1996 = vst [vmem:[%s249 + $0x70] sm:$0xf] %v1868
          %1997 = vst [vmem:[%s249 + $0x74] sm:$0xf] %v1869
          %1998 = vst [vmem:[%s249 + $0x78] sm:$0xf] %v1870
          %1999 = vst [vmem:[%s249 + $0x7c] sm:$0xf] %v1871
          %2000 = vst [vmem:[%s249 + $0x80] sm:$0xf] %v1872
          %2001 = vst [vmem:[%s249 + $0x84] sm:$0xf] %v1873
          %2002 = vst [vmem:[%s249 + $0x88] sm:$0xf] %v1874
          %2003 = vst [vmem:[%s249 + $0x8c] sm:$0xf] %v1875
          %2004 = vst [vmem:[%s249 + $0x90] sm:$0xf] %v1876
          %2005 = vst [vmem:[%s249 + $0x94] sm:$0xf] %v1877
          %2006 = vst [vmem:[%s249 + $0x98] sm:$0xf] %v1878
          %2007 = vst [vmem:[%s249 + $0x9c] sm:$0xf] %v1879
          %2008 = vst [vmem:[%s249 + $0xa0] sm:$0xf] %v1880
          %2009 = vst [vmem:[%s249 + $0xa4] sm:$0xf] %v1881
          %2010 = vst [vmem:[%s249 + $0xa8] sm:$0xf] %v1882
          %2011 = vst [vmem:[%s249 + $0xac] sm:$0xf] %v1883
          %2012 = vst [vmem:[%s249 + $0xb0] sm:$0xf] %v1884
          %2013 = vst [vmem:[%s249 + $0xb4] sm:$0xf] %v1885
          %2014 = vst [vmem:[%s249 + $0xb8] sm:$0xf] %v1886
          %2015 = vst [vmem:[%s249 + $0xbc] sm:$0xf] %v1887
          %2016 = vst [vmem:[%s249 + $0xc0] sm:$0xf] %v1888
          %2017 = vst [vmem:[%s249 + $0xc4] sm:$0xf] %v1889
          %2018 = vst [vmem:[%s249 + $0xc8] sm:$0xf] %v1890
          %2019 = vst [vmem:[%s249 + $0xcc] sm:$0xf] %v1891
          %2020 = vst [vmem:[%s249 + $0xd0] sm:$0xf] %v1892
          %2021 = vst [vmem:[%s249 + $0xd4] sm:$0xf] %v1893
          %2022 = vst [vmem:[%s249 + $0xd8] sm:$0xf] %v1894
          %2023 = vst [vmem:[%s249 + $0xdc] sm:$0xf] %v1895
          %2024 = vst [vmem:[%s249 + $0xe0] sm:$0xf] %v1896
          %2025 = vst [vmem:[%s249 + $0xe4] sm:$0xf] %v1897
          %2026 = vst [vmem:[%s249 + $0xe8] sm:$0xf] %v1898
          %2027 = vst [vmem:[%s249 + $0xec] sm:$0xf] %v1899
          %2028 = vst [vmem:[%s249 + $0xf0] sm:$0xf] %v1900
          %2029 = vst [vmem:[%s249 + $0xf4] sm:$0xf] %v1901
          %2030 = vst [vmem:[%s249 + $0xf8] sm:$0xf] %v1902
          %2031 = vst [vmem:[%s249 + $0xfc] sm:$0xf] %v1903
        $region48: #{tpu_custom_call.1} parent=31 // pred_fallthru
          _
        %s2032 = sand.u32 %s132, 1
        %s2033 = scalar_lea.sflag [#allocation5], %s2032
        %s2034 = sand.u32 %s132, 1
        %s2035 = smul.addr %s2034, 256
        %s2036 = scalar_lea.vmem [#allocation8], %s2035
        // Predicated region
        $region49: #{tpu_custom_call.1} parent=31 // pred_check
          %p2037 = pneg %p142
        $region50: #{tpu_custom_call.1} parent=31 // pred_check_branch
          %2039 = sbr.rel (%p2037) target = $region52
        $region51: #{tpu_custom_call.1} parent=31 // pred_region
          %s2040 = smul.u32 64, %s26
          %s2042 = ssub.s32 4096, 4096
          %2043 = vsyncadd %s2033, %s2042
          %s2044 = sadd.s32 %s27, %s2040
          %s2045 = smul.addr %s2044, 64
          %s2046 = scalar_lea.hbm %s3, %s2045
          %s2047 = sshll.u32 %s2036, 4
          %s2048 = int_to_ptr.vmem [resolvable:$true] %s2047
          %2053 = dma.vmem_to_hbm [thread:$0]  %s2048, 4096, %s2046, %s2033, 64, 64, 4
        $region52: #{tpu_custom_call.1} parent=31 // pred_fallthru
          _
      $region32: #{tpu_custom_call.1} parent=5 // pred_fallthru
        _
      %p2054 = scmp.le.s32.totalorder 2, %s16
      // Predicated region
      $region53: #{tpu_custom_call.1} parent=5 // pred_check
        %p2055 = pneg %p2054
      $region54: #{tpu_custom_call.1} parent=5 // pred_check_branch
        %2057 = sbr.rel (%p2055) target = $region56
      $region55: #{tpu_custom_call.1} parent=5 // pred_region
        %s2058 = ssub.s32 %s16, 2
        // Predicated region
        $region57: #{tpu_custom_call.1} parent=55 // pred_check
          %p2059 = pneg %p148
        $region58: #{tpu_custom_call.1} parent=55 // pred_check_branch
          %2061 = sbr.rel (%p2059) target = $region60
        $region59: #{tpu_custom_call.1} parent=55 // pred_region
          %s2062 = sand.u32 %s133, 1
          %s2063 = scalar_lea.sflag [#allocation5], %s2062
          %s2064 = sand.u32 %s133, 1
          %s2065 = smul.addr %s2064, 256
          %s2066 = scalar_lea.vmem [#allocation8], %s2065
          %2067 = dma.done %s2063, 4096
        $region60: #{tpu_custom_call.1} parent=55 // pred_fallthru
          _
      $region56: #{tpu_custom_call.1} parent=5 // pred_fallthru
        _
    $region6: #{tpu_custom_call.1} parent=1 // loop_footer
      %s20 = sadd.s32 1, %s16
    $region7: #{tpu_custom_call.1} parent=1 // loop_footer_branch
      %15 = sbr.rel target = $region3
    $region8: #{tpu_custom_call.1} parent=1 // loop_exit
      _
    %2068 = vsyncpa [#allocation4], 1
    %s2069 = scalar_lea.sflag [#allocation4], 1
    %2070 = vsyncpa %s2069, 1
    %2071 = vsyncpa [#allocation7], 1
    %2072 = vsyncpa [#allocation5], 1
    %s2073 = scalar_lea.sflag [#allocation5], 1
    %2074 = vsyncpa %s2073, 1

</llo_original>
